<compile_context>
chip_gen: v6e
topology: v6e:2x2x1
jax: 0.10.0
libtpu: 0.0.40
codegen_flags: <defaults>
</compile_context>

<pallas_src>
import jax
import jax.numpy as jnp
from jax.experimental import pallas as pl
from jax.experimental.pallas import tpu as pltpu

# ---------------- model dimensions (small, consistent with the module) ------
BATCH = 8          # batch_size
SEQ = 8            # seq_length
EMB_DIM = 32       # word_embedding_dim
MODEL_DIM = 32     # model_dim (== LSTM input size, args.size = model_dim)
MLP_DIM = 64       # mlp_dim
NUM_CLASSES = 3    # num_classes
VOCAB = 100        # vocab_size
NUM_MLP_LAYERS = 2

LANES = 128        # lane-dense padding width for the weight slab / output

# ---- static row offsets inside the packed weight slab (all 8-row aligned) ---
ROW_WHH = 0                      # (D, 4D)   = (32, 128)
ROW_W1 = ROW_WHH + MODEL_DIM     # (D, 128)  MLP layer 0 weight (lane-padded)
ROW_B1 = ROW_W1 + MODEL_DIM      # (1, 128)  MLP layer 0 bias   (block padded to 8 rows)
ROW_W2 = ROW_B1 + 8              # (128,128) MLP layer 1 weight (padded)
ROW_B2 = ROW_W2 + LANES          # (1, 128)  MLP layer 1 bias
ROW_WC = ROW_B2 + 8              # (128,128) classifier weight  (padded)
ROW_BC = ROW_WC + LANES          # (1, 128)  classifier bias
N_SLAB_ROWS = ROW_BC + 8         # = 344 (multiple of 8)


def rnn_model_kernel(xg_ref,     # VMEM (S, B, 4D) pre-gathered x-gate preacts (+biases, g cols x2)
                     slab_ref,   # VMEM (N_SLAB_ROWS, 128) packed weights
                     out_ref):   # VMEM (B, 128) lane-dense logits (cols >= NUM_CLASSES are 0)
    B, S, D = BATCH, SEQ, MODEL_DIM

    whh = slab_ref[ROW_WHH:ROW_WHH + D, :]          # (D, 4D), g columns pre-scaled x2
    h = jnp.zeros((B, D), jnp.float32)
    c = jnp.zeros((B, D), jnp.float32)

    # ---- LSTM recurrence, fully unrolled (num_layers=1, uni-dir, h0=c0=0) ----
    for t in range(S):
        # x-gate term is a free static slice of the pre-gathered tensor.
        gates = xg_ref[t] + jnp.dot(h, whh, preferred_element_type=jnp.float32)   # (B, 4D)

        # Single full-vreg EUP pass.  PyTorch LSTM gate order: i, f, g, o.
        sig = jax.nn.sigmoid(gates)
        i_g = sig[:, 0 * D:1 * D]
        f_g = sig[:, 1 * D:2 * D]
        g_g = 2.0 * sig[:, 2 * D:3 * D] - 1.0       # == tanh(original g preact)
        o_g = sig[:, 3 * D:4 * D]

        c = f_g * c + i_g * g_g
        h = o_g * jnp.tanh(c)                        # second (narrow) EUP pass

    # ---- features = h (use_sentence_pair=False) -> MLP (eval mode) ----------
    w1 = slab_ref[ROW_W1:ROW_W1 + D, :]
    b1 = slab_ref[ROW_B1:ROW_B1 + 1, :]
    w2 = slab_ref[ROW_W2:ROW_W2 + LANES, :]
    b2 = slab_ref[ROW_B2:ROW_B2 + 1, :]
    wc = slab_ref[ROW_WC:ROW_WC + LANES, :]
    bc = slab_ref[ROW_BC:ROW_BC + 1, :]

    h1 = jnp.maximum(jnp.dot(h, w1, preferred_element_type=jnp.float32) + b1, 0.0)
    h2 = jnp.maximum(jnp.dot(h1, w2, preferred_element_type=jnp.float32) + b2, 0.0)
    out_ref[...] = jnp.dot(h2, wc, preferred_element_type=jnp.float32) + bc


def init_params(key):
    ks = jax.random.split(key, 12)
    s = 0.1
    p = {}
    p["embedding"] = jax.random.normal(ks[0], (VOCAB, EMB_DIM), jnp.float32) * s
    # context encoder Linear(E -> D) : torch weight (D, E), bias (D,)
    p["w_enc"] = jax.random.normal(ks[1], (MODEL_DIM, EMB_DIM), jnp.float32) * s
    p["b_enc"] = jax.random.normal(ks[2], (MODEL_DIM,), jnp.float32) * s
    # LSTM(input=D, hidden=D): weight_ih (4D, D), weight_hh (4D, D), biases (4D,)
    p["w_ih"] = jax.random.normal(ks[3], (4 * MODEL_DIM, MODEL_DIM), jnp.float32) * s
    p["w_hh"] = jax.random.normal(ks[4], (4 * MODEL_DIM, MODEL_DIM), jnp.float32) * s
    p["b_ih"] = jax.random.normal(ks[5], (4 * MODEL_DIM,), jnp.float32) * s
    p["b_hh"] = jax.random.normal(ks[6], (4 * MODEL_DIM,), jnp.float32) * s
    # MLP layer 0 / 1, classifier
    p["w1"] = jax.random.normal(ks[7], (MLP_DIM, MODEL_DIM), jnp.float32) * s
    p["b1"] = jax.random.normal(ks[8], (MLP_DIM,), jnp.float32) * s
    p["w2"] = jax.random.normal(ks[9], (MLP_DIM, MLP_DIM), jnp.float32) * s
    p["b2"] = jax.random.normal(ks[10], (MLP_DIM,), jnp.float32) * s
    p["wc"] = jax.random.normal(ks[11], (NUM_CLASSES, MLP_DIM), jnp.float32) * s
    p["bc"] = jnp.zeros((NUM_CLASSES,), jnp.float32)
    return p


def prepare_kernel_params(p):
    """One-time (init-time) weight preprocessing:
      * fold embed -> encode -> W_ih (+ b_ih + b_hh) into a per-token lookup table,
      * pre-scale g-gate columns by 2 (tanh(x) = 2*sigmoid(2x) - 1 trick),
      * pack W_hh + MLP + classifier into one lane-dense (344, 128) slab."""
    D = MODEL_DIM
    # --- fused per-token x-gate table (never enters the kernel; gathered in wrapper)
    w_fused = p["w_enc"].T @ p["w_ih"].T                          # (E, 4D)
    b_fused = p["b_enc"] @ p["w_ih"].T + p["b_ih"] + p["b_hh"]    # (4D,)
    table_xb = p["embedding"] @ w_fused + b_fused[None, :]        # (VOCAB, 4D)

    # g-gate pre-scale x2 on both the table and W_hh (zero in-kernel cost).
    gscale = jnp.ones((4 * D,), jnp.float32).at[2 * D:3 * D].set(2.0)
    table_xb = table_xb * gscale[None, :]
    whh = p["w_hh"].T * gscale[None, :]                           # (D, 4D)

    def pad_to(x, rows, cols):
        return jnp.pad(x, ((0, rows - x.shape[0]), (0, cols - x.shape[1])))

    w1p = pad_to(p["w1"].T, D, LANES)             # (32, 128)
    b1p = pad_to(p["b1"][None, :], 1, LANES)      # (1, 128)
    w2p = pad_to(p["w2"].T, LANES, LANES)         # (128, 128)
    b2p = pad_to(p["b2"][None, :], 1, LANES)
    wcp = pad_to(p["wc"].T, LANES, LANES)         # (128, 128); cols >= NUM_CLASSES are 0
    bcp = pad_to(p["bc"][None, :], 1, LANES)

    slab = jnp.zeros((N_SLAB_ROWS, LANES), jnp.float32)
    slab = slab.at[ROW_WHH:ROW_WHH + D, :].set(whh)
    slab = slab.at[ROW_W1:ROW_W1 + D, :].set(w1p)
    slab = slab.at[ROW_B1:ROW_B1 + 1, :].set(b1p)
    slab = slab.at[ROW_W2:ROW_W2 + LANES, :].set(w2p)
    slab = slab.at[ROW_B2:ROW_B2 + 1, :].set(b2p)
    slab = slab.at[ROW_WC:ROW_WC + LANES, :].set(wcp)
    slab = slab.at[ROW_BC:ROW_BC + 1, :].set(bcp)

    return {"table_xb": table_xb, "slab": slab}


def rnn_model_forward(tokens, kp):
    """tokens: (B, S) int32 -> logits (B, NUM_CLASSES)."""
    B, S = tokens.shape
    D = MODEL_DIM

    # Pre-gather the fused x-gate rows outside the kernel: (S, B, 4D) = 32 KB.
    # Keeps the (VOCAB, 4D) table out of VMEM entirely (vocab-size safe on v5e).
    xg_all = jnp.take(kp["table_xb"], tokens.T, axis=0)           # (S, B, 4D)

    vmem = pl.BlockSpec(memory_space=pltpu.MemorySpace.VMEM)

    bytes_accessed = (int(xg_all.size) + int(kp["slab"].size) + B * LANES) * 4
    cost = pl.CostEstimate(
        flops=2 * (S * B * D * 4 * D
                   + B * (D * LANES + LANES * LANES + LANES * LANES)),
        transcendentals=S * (B * 4 * D + B * D),   # one sigmoid(B,4D) + one tanh(B,D) per step
        bytes_accessed=bytes_accessed,
    )

    out = pl.pallas_call(
        rnn_model_kernel,
        out_shape=jax.ShapeDtypeStruct((B, LANES), jnp.float32),
        in_specs=[vmem, vmem],
        out_specs=vmem,
        cost_estimate=cost,
    )(xg_all, kp["slab"])
    # TODO(synk): for a stream of many batches on v7x, add a grid axis over
    # batch tiles with dimension_semantics=("parallel",) to use both TensorCores.
    return out[:, :NUM_CLASSES]


def rnn_model_reference(tokens, p):
    """Pure-JAX reference (unfused, original op order) for correctness checking."""
    emb = jnp.take(p["embedding"], tokens, axis=0)                  # (B, S, E)
    x = emb @ p["w_enc"].T + p["b_enc"]                             # (B, S, D)
    B = tokens.shape[0]
    h = jnp.zeros((B, MODEL_DIM), jnp.float32)
    c = jnp.zeros((B, MODEL_DIM), jnp.float32)
    D = MODEL_DIM
    for t in range(tokens.shape[1]):
        gates = x[:, t, :] @ p["w_ih"].T + p["b_ih"] + h @ p["w_hh"].T + p["b_hh"]
        i_g = jax.nn.sigmoid(gates[:, 0 * D:1 * D])
        f_g = jax.nn.sigmoid(gates[:, 1 * D:2 * D])
        g_g = jnp.tanh(gates[:, 2 * D:3 * D])
        o_g = jax.nn.sigmoid(gates[:, 3 * D:4 * D])
        c = f_g * c + i_g * g_g
        h = o_g * jnp.tanh(c)
    h1 = jax.nn.relu(h @ p["w1"].T + p["b1"])
    h2 = jax.nn.relu(h1 @ p["w2"].T + p["b2"])
    return h2 @ p["wc"].T + p["bc"]


if __name__ == "__main__":
    key = jax.random.PRNGKey(0)
    k_tok, k_par = jax.random.split(key)
    tokens = jax.random.randint(k_tok, (BATCH, SEQ), 0, VOCAB, dtype=jnp.int32)
    params = init_params(k_par)
    kparams = prepare_kernel_params(params)

    out = rnn_model_forward(tokens, kparams)
    out = jax.block_until_ready(out)

    ref = rnn_model_reference(tokens, params)
    assert out.shape == (BATCH, NUM_CLASSES)
    assert jnp.allclose(out, ref, atol=1e-4, rtol=1e-4), "mismatch vs JAX reference"

    # TODO(synk): dropout layers (embedding + classifier) are eval-mode
    # identities; training-mode stochastic dropout is not implemented.
    print("KERNEL_OK")
</pallas_src>

<mosaic_0001>
module attributes {stable_mosaic.version = 11 : i64} {
  func.func @rnn_model_kernel(%arg0: memref<8x8x128xf32, #tpu.memory_space<vmem>>, %arg1: memref<344x128xf32, #tpu.memory_space<vmem>>, %arg2: memref<8x128xf32, #tpu.memory_space<vmem>>) attributes {dimension_semantics = [], scalar_prefetch = 0 : i64, scratch_operands = 0 : i64, tpu.core_type = #tpu.core_type<tc>} {
    %c0 = arith.constant 0 : index
    %c0_0 = arith.constant 0 : index
    %0 = vector.load %arg1[%c0, %c0_0] : memref<344x128xf32, #tpu.memory_space<vmem>>, vector<32x128xf32>
    %cst = arith.constant 0.000000e+00 : f32
    %1 = vector.broadcast %cst : f32 to vector<8x32xf32>
    %cst_1 = arith.constant 0.000000e+00 : f32
    %2 = vector.broadcast %cst_1 : f32 to vector<8x32xf32>
    %c0_2 = arith.constant 0 : index
    %c0_3 = arith.constant 0 : index
    %c0_4 = arith.constant 0 : index
    %3 = vector.load %arg0[%c0_2, %c0_3, %c0_4] : memref<8x8x128xf32, #tpu.memory_space<vmem>>, vector<1x8x128xf32>
    %4 = vector.shape_cast %3 : vector<1x8x128xf32> to vector<8x128xf32>
    %cst_5 = arith.constant dense<0.000000e+00> : vector<8x128xf32>
    %5 = tpu.matmul %1, %0, %cst_5 {dimension_numbers = #tpu.dot_dimension_numbers<[1], [0], [0], [1], [0, 0, 1, 1], [], []>} : vector<8x32xf32>, vector<32x128xf32>, vector<8x128xf32> -> vector<8x128xf32>
    %6 = arith.addf %4, %5 : vector<8x128xf32>
    %7 = arith.negf %6 : vector<8x128xf32>
    %8 = math.exp %7 : vector<8x128xf32>
    %cst_6 = arith.constant 1.000000e+00 : f32
    %9 = vector.broadcast %cst_6 : f32 to vector<8x128xf32>
    %10 = arith.addf %9, %8 : vector<8x128xf32>
    %11 = arith.divf %9, %10 : vector<8x128xf32>
    %12 = vector.extract_strided_slice %11 {offsets = [0, 0], sizes = [8, 32], strides = [1, 1]} : vector<8x128xf32> to vector<8x32xf32>
    %13 = vector.extract_strided_slice %11 {offsets = [0, 32], sizes = [8, 32], strides = [1, 1]} : vector<8x128xf32> to vector<8x32xf32>
    %14 = vector.extract_strided_slice %11 {offsets = [0, 64], sizes = [8, 32], strides = [1, 1]} : vector<8x128xf32> to vector<8x32xf32>
    %cst_7 = arith.constant 2.000000e+00 : f32
    %15 = vector.broadcast %cst_7 : f32 to vector<8x32xf32>
    %16 = arith.mulf %15, %14 : vector<8x32xf32>
    %cst_8 = arith.constant 1.000000e+00 : f32
    %17 = vector.broadcast %cst_8 : f32 to vector<8x32xf32>
    %18 = arith.subf %16, %17 : vector<8x32xf32>
    %19 = vector.extract_strided_slice %11 {offsets = [0, 96], sizes = [8, 32], strides = [1, 1]} : vector<8x128xf32> to vector<8x32xf32>
    %20 = arith.mulf %13, %2 : vector<8x32xf32>
    %21 = arith.mulf %12, %18 : vector<8x32xf32>
    %22 = arith.addf %20, %21 : vector<8x32xf32>
    %23 = math.tanh %22 : vector<8x32xf32>
    %24 = arith.mulf %19, %23 : vector<8x32xf32>
    %c1 = arith.constant 1 : index
    %c0_9 = arith.constant 0 : index
    %c0_10 = arith.constant 0 : index
    %25 = vector.load %arg0[%c1, %c0_9, %c0_10] : memref<8x8x128xf32, #tpu.memory_space<vmem>>, vector<1x8x128xf32>
    %26 = vector.shape_cast %25 : vector<1x8x128xf32> to vector<8x128xf32>
    %cst_11 = arith.constant dense<0.000000e+00> : vector<8x128xf32>
    %27 = tpu.matmul %24, %0, %cst_11 {dimension_numbers = #tpu.dot_dimension_numbers<[1], [0], [0], [1], [0, 0, 1, 1], [], []>} : vector<8x32xf32>, vector<32x128xf32>, vector<8x128xf32> -> vector<8x128xf32>
    %28 = arith.addf %26, %27 : vector<8x128xf32>
    %29 = arith.negf %28 : vector<8x128xf32>
    %30 = math.exp %29 : vector<8x128xf32>
    %cst_12 = arith.constant 1.000000e+00 : f32
    %31 = vector.broadcast %cst_12 : f32 to vector<8x128xf32>
    %32 = arith.addf %31, %30 : vector<8x128xf32>
    %33 = arith.divf %31, %32 : vector<8x128xf32>
    %34 = vector.extract_strided_slice %33 {offsets = [0, 0], sizes = [8, 32], strides = [1, 1]} : vector<8x128xf32> to vector<8x32xf32>
    %35 = vector.extract_strided_slice %33 {offsets = [0, 32], sizes = [8, 32], strides = [1, 1]} : vector<8x128xf32> to vector<8x32xf32>
    %36 = vector.extract_strided_slice %33 {offsets = [0, 64], sizes = [8, 32], strides = [1, 1]} : vector<8x128xf32> to vector<8x32xf32>
    %cst_13 = arith.constant 2.000000e+00 : f32
    %37 = vector.broadcast %cst_13 : f32 to vector<8x32xf32>
    %38 = arith.mulf %37, %36 : vector<8x32xf32>
    %cst_14 = arith.constant 1.000000e+00 : f32
    %39 = vector.broadcast %cst_14 : f32 to vector<8x32xf32>
    %40 = arith.subf %38, %39 : vector<8x32xf32>
    %41 = vector.extract_strided_slice %33 {offsets = [0, 96], sizes = [8, 32], strides = [1, 1]} : vector<8x128xf32> to vector<8x32xf32>
    %42 = arith.mulf %35, %22 : vector<8x32xf32>
    %43 = arith.mulf %34, %40 : vector<8x32xf32>
    %44 = arith.addf %42, %43 : vector<8x32xf32>
    %45 = math.tanh %44 : vector<8x32xf32>
    %46 = arith.mulf %41, %45 : vector<8x32xf32>
    %c2 = arith.constant 2 : index
    %c0_15 = arith.constant 0 : index
    %c0_16 = arith.constant 0 : index
    %47 = vector.load %arg0[%c2, %c0_15, %c0_16] : memref<8x8x128xf32, #tpu.memory_space<vmem>>, vector<1x8x128xf32>
    %48 = vector.shape_cast %47 : vector<1x8x128xf32> to vector<8x128xf32>
    %cst_17 = arith.constant dense<0.000000e+00> : vector<8x128xf32>
    %49 = tpu.matmul %46, %0, %cst_17 {dimension_numbers = #tpu.dot_dimension_numbers<[1], [0], [0], [1], [0, 0, 1, 1], [], []>} : vector<8x32xf32>, vector<32x128xf32>, vector<8x128xf32> -> vector<8x128xf32>
    %50 = arith.addf %48, %49 : vector<8x128xf32>
    %51 = arith.negf %50 : vector<8x128xf32>
    %52 = math.exp %51 : vector<8x128xf32>
    %cst_18 = arith.constant 1.000000e+00 : f32
    %53 = vector.broadcast %cst_18 : f32 to vector<8x128xf32>
    %54 = arith.addf %53, %52 : vector<8x128xf32>
    %55 = arith.divf %53, %54 : vector<8x128xf32>
    %56 = vector.extract_strided_slice %55 {offsets = [0, 0], sizes = [8, 32], strides = [1, 1]} : vector<8x128xf32> to vector<8x32xf32>
    %57 = vector.extract_strided_slice %55 {offsets = [0, 32], sizes = [8, 32], strides = [1, 1]} : vector<8x128xf32> to vector<8x32xf32>
    %58 = vector.extract_strided_slice %55 {offsets = [0, 64], sizes = [8, 32], strides = [1, 1]} : vector<8x128xf32> to vector<8x32xf32>
    %cst_19 = arith.constant 2.000000e+00 : f32
    %59 = vector.broadcast %cst_19 : f32 to vector<8x32xf32>
    %60 = arith.mulf %59, %58 : vector<8x32xf32>
    %cst_20 = arith.constant 1.000000e+00 : f32
    %61 = vector.broadcast %cst_20 : f32 to vector<8x32xf32>
    %62 = arith.subf %60, %61 : vector<8x32xf32>
    %63 = vector.extract_strided_slice %55 {offsets = [0, 96], sizes = [8, 32], strides = [1, 1]} : vector<8x128xf32> to vector<8x32xf32>
    %64 = arith.mulf %57, %44 : vector<8x32xf32>
    %65 = arith.mulf %56, %62 : vector<8x32xf32>
    %66 = arith.addf %64, %65 : vector<8x32xf32>
    %67 = math.tanh %66 : vector<8x32xf32>
    %68 = arith.mulf %63, %67 : vector<8x32xf32>
    %c3 = arith.constant 3 : index
    %c0_21 = arith.constant 0 : index
    %c0_22 = arith.constant 0 : index
    %69 = vector.load %arg0[%c3, %c0_21, %c0_22] : memref<8x8x128xf32, #tpu.memory_space<vmem>>, vector<1x8x128xf32>
    %70 = vector.shape_cast %69 : vector<1x8x128xf32> to vector<8x128xf32>
    %cst_23 = arith.constant dense<0.000000e+00> : vector<8x128xf32>
    %71 = tpu.matmul %68, %0, %cst_23 {dimension_numbers = #tpu.dot_dimension_numbers<[1], [0], [0], [1], [0, 0, 1, 1], [], []>} : vector<8x32xf32>, vector<32x128xf32>, vector<8x128xf32> -> vector<8x128xf32>
    %72 = arith.addf %70, %71 : vector<8x128xf32>
    %73 = arith.negf %72 : vector<8x128xf32>
    %74 = math.exp %73 : vector<8x128xf32>
    %cst_24 = arith.constant 1.000000e+00 : f32
    %75 = vector.broadcast %cst_24 : f32 to vector<8x128xf32>
    %76 = arith.addf %75, %74 : vector<8x128xf32>
    %77 = arith.divf %75, %76 : vector<8x128xf32>
    %78 = vector.extract_strided_slice %77 {offsets = [0, 0], sizes = [8, 32], strides = [1, 1]} : vector<8x128xf32> to vector<8x32xf32>
    %79 = vector.extract_strided_slice %77 {offsets = [0, 32], sizes = [8, 32], strides = [1, 1]} : vector<8x128xf32> to vector<8x32xf32>
    %80 = vector.extract_strided_slice %77 {offsets = [0, 64], sizes = [8, 32], strides = [1, 1]} : vector<8x128xf32> to vector<8x32xf32>
    %cst_25 = arith.constant 2.000000e+00 : f32
    %81 = vector.broadcast %cst_25 : f32 to vector<8x32xf32>
    %82 = arith.mulf %81, %80 : vector<8x32xf32>
    %cst_26 = arith.constant 1.000000e+00 : f32
    %83 = vector.broadcast %cst_26 : f32 to vector<8x32xf32>
    %84 = arith.subf %82, %83 : vector<8x32xf32>
    %85 = vector.extract_strided_slice %77 {offsets = [0, 96], sizes = [8, 32], strides = [1, 1]} : vector<8x128xf32> to vector<8x32xf32>
    %86 = arith.mulf %79, %66 : vector<8x32xf32>
    %87 = arith.mulf %78, %84 : vector<8x32xf32>
    %88 = arith.addf %86, %87 : vector<8x32xf32>
    %89 = math.tanh %88 : vector<8x32xf32>
    %90 = arith.mulf %85, %89 : vector<8x32xf32>
    %c4 = arith.constant 4 : index
    %c0_27 = arith.constant 0 : index
    %c0_28 = arith.constant 0 : index
    %91 = vector.load %arg0[%c4, %c0_27, %c0_28] : memref<8x8x128xf32, #tpu.memory_space<vmem>>, vector<1x8x128xf32>
    %92 = vector.shape_cast %91 : vector<1x8x128xf32> to vector<8x128xf32>
    %cst_29 = arith.constant dense<0.000000e+00> : vector<8x128xf32>
    %93 = tpu.matmul %90, %0, %cst_29 {dimension_numbers = #tpu.dot_dimension_numbers<[1], [0], [0], [1], [0, 0, 1, 1], [], []>} : vector<8x32xf32>, vector<32x128xf32>, vector<8x128xf32> -> vector<8x128xf32>
    %94 = arith.addf %92, %93 : vector<8x128xf32>
    %95 = arith.negf %94 : vector<8x128xf32>
    %96 = math.exp %95 : vector<8x128xf32>
    %cst_30 = arith.constant 1.000000e+00 : f32
    %97 = vector.broadcast %cst_30 : f32 to vector<8x128xf32>
    %98 = arith.addf %97, %96 : vector<8x128xf32>
    %99 = arith.divf %97, %98 : vector<8x128xf32>
    %100 = vector.extract_strided_slice %99 {offsets = [0, 0], sizes = [8, 32], strides = [1, 1]} : vector<8x128xf32> to vector<8x32xf32>
    %101 = vector.extract_strided_slice %99 {offsets = [0, 32], sizes = [8, 32], strides = [1, 1]} : vector<8x128xf32> to vector<8x32xf32>
    %102 = vector.extract_strided_slice %99 {offsets = [0, 64], sizes = [8, 32], strides = [1, 1]} : vector<8x128xf32> to vector<8x32xf32>
    %cst_31 = arith.constant 2.000000e+00 : f32
    %103 = vector.broadcast %cst_31 : f32 to vector<8x32xf32>
    %104 = arith.mulf %103, %102 : vector<8x32xf32>
    %cst_32 = arith.constant 1.000000e+00 : f32
    %105 = vector.broadcast %cst_32 : f32 to vector<8x32xf32>
    %106 = arith.subf %104, %105 : vector<8x32xf32>
    %107 = vector.extract_strided_slice %99 {offsets = [0, 96], sizes = [8, 32], strides = [1, 1]} : vector<8x128xf32> to vector<8x32xf32>
    %108 = arith.mulf %101, %88 : vector<8x32xf32>
    %109 = arith.mulf %100, %106 : vector<8x32xf32>
    %110 = arith.addf %108, %109 : vector<8x32xf32>
    %111 = math.tanh %110 : vector<8x32xf32>
    %112 = arith.mulf %107, %111 : vector<8x32xf32>
    %c5 = arith.constant 5 : index
    %c0_33 = arith.constant 0 : index
    %c0_34 = arith.constant 0 : index
    %113 = vector.load %arg0[%c5, %c0_33, %c0_34] : memref<8x8x128xf32, #tpu.memory_space<vmem>>, vector<1x8x128xf32>
    %114 = vector.shape_cast %113 : vector<1x8x128xf32> to vector<8x128xf32>
    %cst_35 = arith.constant dense<0.000000e+00> : vector<8x128xf32>
    %115 = tpu.matmul %112, %0, %cst_35 {dimension_numbers = #tpu.dot_dimension_numbers<[1], [0], [0], [1], [0, 0, 1, 1], [], []>} : vector<8x32xf32>, vector<32x128xf32>, vector<8x128xf32> -> vector<8x128xf32>
    %116 = arith.addf %114, %115 : vector<8x128xf32>
    %117 = arith.negf %116 : vector<8x128xf32>
    %118 = math.exp %117 : vector<8x128xf32>
    %cst_36 = arith.constant 1.000000e+00 : f32
    %119 = vector.broadcast %cst_36 : f32 to vector<8x128xf32>
    %120 = arith.addf %119, %118 : vector<8x128xf32>
    %121 = arith.divf %119, %120 : vector<8x128xf32>
    %122 = vector.extract_strided_slice %121 {offsets = [0, 0], sizes = [8, 32], strides = [1, 1]} : vector<8x128xf32> to vector<8x32xf32>
    %123 = vector.extract_strided_slice %121 {offsets = [0, 32], sizes = [8, 32], strides = [1, 1]} : vector<8x128xf32> to vector<8x32xf32>
    %124 = vector.extract_strided_slice %121 {offsets = [0, 64], sizes = [8, 32], strides = [1, 1]} : vector<8x128xf32> to vector<8x32xf32>
    %cst_37 = arith.constant 2.000000e+00 : f32
    %125 = vector.broadcast %cst_37 : f32 to vector<8x32xf32>
    %126 = arith.mulf %125, %124 : vector<8x32xf32>
    %cst_38 = arith.constant 1.000000e+00 : f32
    %127 = vector.broadcast %cst_38 : f32 to vector<8x32xf32>
    %128 = arith.subf %126, %127 : vector<8x32xf32>
    %129 = vector.extract_strided_slice %121 {offsets = [0, 96], sizes = [8, 32], strides = [1, 1]} : vector<8x128xf32> to vector<8x32xf32>
    %130 = arith.mulf %123, %110 : vector<8x32xf32>
    %131 = arith.mulf %122, %128 : vector<8x32xf32>
    %132 = arith.addf %130, %131 : vector<8x32xf32>
    %133 = math.tanh %132 : vector<8x32xf32>
    %134 = arith.mulf %129, %133 : vector<8x32xf32>
    %c6 = arith.constant 6 : index
    %c0_39 = arith.constant 0 : index
    %c0_40 = arith.constant 0 : index
    %135 = vector.load %arg0[%c6, %c0_39, %c0_40] : memref<8x8x128xf32, #tpu.memory_space<vmem>>, vector<1x8x128xf32>
    %136 = vector.shape_cast %135 : vector<1x8x128xf32> to vector<8x128xf32>
    %cst_41 = arith.constant dense<0.000000e+00> : vector<8x128xf32>
    %137 = tpu.matmul %134, %0, %cst_41 {dimension_numbers = #tpu.dot_dimension_numbers<[1], [0], [0], [1], [0, 0, 1, 1], [], []>} : vector<8x32xf32>, vector<32x128xf32>, vector<8x128xf32> -> vector<8x128xf32>
    %138 = arith.addf %136, %137 : vector<8x128xf32>
    %139 = arith.negf %138 : vector<8x128xf32>
    %140 = math.exp %139 : vector<8x128xf32>
    %cst_42 = arith.constant 1.000000e+00 : f32
    %141 = vector.broadcast %cst_42 : f32 to vector<8x128xf32>
    %142 = arith.addf %141, %140 : vector<8x128xf32>
    %143 = arith.divf %141, %142 : vector<8x128xf32>
    %144 = vector.extract_strided_slice %143 {offsets = [0, 0], sizes = [8, 32], strides = [1, 1]} : vector<8x128xf32> to vector<8x32xf32>
    %145 = vector.extract_strided_slice %143 {offsets = [0, 32], sizes = [8, 32], strides = [1, 1]} : vector<8x128xf32> to vector<8x32xf32>
    %146 = vector.extract_strided_slice %143 {offsets = [0, 64], sizes = [8, 32], strides = [1, 1]} : vector<8x128xf32> to vector<8x32xf32>
    %cst_43 = arith.constant 2.000000e+00 : f32
    %147 = vector.broadcast %cst_43 : f32 to vector<8x32xf32>
    %148 = arith.mulf %147, %146 : vector<8x32xf32>
    %cst_44 = arith.constant 1.000000e+00 : f32
    %149 = vector.broadcast %cst_44 : f32 to vector<8x32xf32>
    %150 = arith.subf %148, %149 : vector<8x32xf32>
    %151 = vector.extract_strided_slice %143 {offsets = [0, 96], sizes = [8, 32], strides = [1, 1]} : vector<8x128xf32> to vector<8x32xf32>
    %152 = arith.mulf %145, %132 : vector<8x32xf32>
    %153 = arith.mulf %144, %150 : vector<8x32xf32>
    %154 = arith.addf %152, %153 : vector<8x32xf32>
    %155 = math.tanh %154 : vector<8x32xf32>
    %156 = arith.mulf %151, %155 : vector<8x32xf32>
    %c7 = arith.constant 7 : index
    %c0_45 = arith.constant 0 : index
    %c0_46 = arith.constant 0 : index
    %157 = vector.load %arg0[%c7, %c0_45, %c0_46] : memref<8x8x128xf32, #tpu.memory_space<vmem>>, vector<1x8x128xf32>
    %158 = vector.shape_cast %157 : vector<1x8x128xf32> to vector<8x128xf32>
    %cst_47 = arith.constant dense<0.000000e+00> : vector<8x128xf32>
    %159 = tpu.matmul %156, %0, %cst_47 {dimension_numbers = #tpu.dot_dimension_numbers<[1], [0], [0], [1], [0, 0, 1, 1], [], []>} : vector<8x32xf32>, vector<32x128xf32>, vector<8x128xf32> -> vector<8x128xf32>
    %160 = arith.addf %158, %159 : vector<8x128xf32>
    %161 = arith.negf %160 : vector<8x128xf32>
    %162 = math.exp %161 : vector<8x128xf32>
    %cst_48 = arith.constant 1.000000e+00 : f32
    %163 = vector.broadcast %cst_48 : f32 to vector<8x128xf32>
    %164 = arith.addf %163, %162 : vector<8x128xf32>
    %165 = arith.divf %163, %164 : vector<8x128xf32>
    %166 = vector.extract_strided_slice %165 {offsets = [0, 0], sizes = [8, 32], strides = [1, 1]} : vector<8x128xf32> to vector<8x32xf32>
    %167 = vector.extract_strided_slice %165 {offsets = [0, 32], sizes = [8, 32], strides = [1, 1]} : vector<8x128xf32> to vector<8x32xf32>
    %168 = vector.extract_strided_slice %165 {offsets = [0, 64], sizes = [8, 32], strides = [1, 1]} : vector<8x128xf32> to vector<8x32xf32>
    %cst_49 = arith.constant 2.000000e+00 : f32
    %169 = vector.broadcast %cst_49 : f32 to vector<8x32xf32>
    %170 = arith.mulf %169, %168 : vector<8x32xf32>
    %cst_50 = arith.constant 1.000000e+00 : f32
    %171 = vector.broadcast %cst_50 : f32 to vector<8x32xf32>
    %172 = arith.subf %170, %171 : vector<8x32xf32>
    %173 = vector.extract_strided_slice %165 {offsets = [0, 96], sizes = [8, 32], strides = [1, 1]} : vector<8x128xf32> to vector<8x32xf32>
    %174 = arith.mulf %167, %154 : vector<8x32xf32>
    %175 = arith.mulf %166, %172 : vector<8x32xf32>
    %176 = arith.addf %174, %175 : vector<8x32xf32>
    %177 = math.tanh %176 : vector<8x32xf32>
    %178 = arith.mulf %173, %177 : vector<8x32xf32>
    %c32 = arith.constant 32 : index
    %c0_51 = arith.constant 0 : index
    %179 = vector.load %arg1[%c32, %c0_51] : memref<344x128xf32, #tpu.memory_space<vmem>>, vector<32x128xf32>
    %c64 = arith.constant 64 : index
    %c0_52 = arith.constant 0 : index
    %180 = vector.load %arg1[%c64, %c0_52] : memref<344x128xf32, #tpu.memory_space<vmem>>, vector<1x128xf32>
    %c72 = arith.constant 72 : index
    %c0_53 = arith.constant 0 : index
    %181 = vector.load %arg1[%c72, %c0_53] : memref<344x128xf32, #tpu.memory_space<vmem>>, vector<128x128xf32>
    %c200 = arith.constant 200 : index
    %c0_54 = arith.constant 0 : index
    %182 = vector.load %arg1[%c200, %c0_54] : memref<344x128xf32, #tpu.memory_space<vmem>>, vector<1x128xf32>
    %c208 = arith.constant 208 : index
    %c0_55 = arith.constant 0 : index
    %183 = vector.load %arg1[%c208, %c0_55] : memref<344x128xf32, #tpu.memory_space<vmem>>, vector<128x128xf32>
    %c336 = arith.constant 336 : index
    %c0_56 = arith.constant 0 : index
    %184 = vector.load %arg1[%c336, %c0_56] : memref<344x128xf32, #tpu.memory_space<vmem>>, vector<1x128xf32>
    %cst_57 = arith.constant dense<0.000000e+00> : vector<8x128xf32>
    %185 = tpu.matmul %178, %179, %cst_57 {dimension_numbers = #tpu.dot_dimension_numbers<[1], [0], [0], [1], [0, 0, 1, 1], [], []>} : vector<8x32xf32>, vector<32x128xf32>, vector<8x128xf32> -> vector<8x128xf32>
    %186 = vector.broadcast %180 : vector<1x128xf32> to vector<8x128xf32>
    %187 = arith.addf %185, %186 : vector<8x128xf32>
    %cst_58 = arith.constant 0.000000e+00 : f32
    %188 = vector.broadcast %cst_58 : f32 to vector<8x128xf32>
    %189 = arith.maximumf %187, %188 : vector<8x128xf32>
    %cst_59 = arith.constant dense<0.000000e+00> : vector<8x128xf32>
    %190 = tpu.matmul %189, %181, %cst_59 {dimension_numbers = #tpu.dot_dimension_numbers<[1], [0], [0], [1], [0, 0, 1, 1], [], []>} : vector<8x128xf32>, vector<128x128xf32>, vector<8x128xf32> -> vector<8x128xf32>
    %191 = vector.broadcast %182 : vector<1x128xf32> to vector<8x128xf32>
    %192 = arith.addf %190, %191 : vector<8x128xf32>
    %cst_60 = arith.constant 0.000000e+00 : f32
    %193 = vector.broadcast %cst_60 : f32 to vector<8x128xf32>
    %194 = arith.maximumf %192, %193 : vector<8x128xf32>
    %cst_61 = arith.constant dense<0.000000e+00> : vector<8x128xf32>
    %195 = tpu.matmul %194, %183, %cst_61 {dimension_numbers = #tpu.dot_dimension_numbers<[1], [0], [0], [1], [0, 0, 1, 1], [], []>} : vector<8x128xf32>, vector<128x128xf32>, vector<8x128xf32> -> vector<8x128xf32>
    %196 = vector.broadcast %184 : vector<1x128xf32> to vector<8x128xf32>
    %197 = arith.addf %195, %196 : vector<8x128xf32>
    %c0_62 = arith.constant 0 : index
    %c0_63 = arith.constant 0 : index
    %198 = vector.load %arg2[%c0_62, %c0_63] : memref<8x128xf32, #tpu.memory_space<vmem>>, vector<8x128xf32>
    tpu.vector_store %arg2[%c0_62, %c0_63], %197 {strides = array<i32>} : memref<8x128xf32, #tpu.memory_space<vmem>>, vector<8x128xf32>,
    return
  }
}

</mosaic_0001>

<llo_original>
// kernel: tpu_custom_call.1
$region0: #{tpu_custom_call.1}
  #allocation0 [shape = 'u32[]', space=smem, size = 0x4, offset = 0x4, fixed_abs, tag = 'smem constant byte address 0x4 - core index']
  #allocation1 [shape = 'u32[144,128]{1,0:T(1,128)}', space=vmem, size = 0x12000, scoped, tag = 'internal scratch']
  %s0 = inlined_call_operand.hbm [shape: f32[8,8,128], index: 0, kind: input, shape index: {}]
  %s1 = inlined_call_operand.hbm [shape: f32[344,128], index: 1, kind: input, shape index: {}]
  %s2 = inlined_call_operand.hbm [shape: f32[8,128], index: 2, kind: output, shape index: {}]
  %s3 = sld [smem:[#allocation0]]
  $region26: #{tpu_custom_call.1} parent=0
    _
  %s5 = ssub.s32 1, %s3
  %s6 = scalar_select 0, %s5, %s3
  $region1: #{tpu_custom_call.1} parent=0
    #allocation2 [shape = 'u8[32768]{0}', space=vmem, size = 0x8000, scoped, tag = 'input window, operand 0, single buffered']
    #allocation3 [shape = 's32[1]{0}', space=sflag, size = 0x4, scoped, tag = 'scoped memory for tpu_custom_call.1']
    #allocation4 [shape = 's32[1]{0}', space=sflag, size = 0x4, scoped, tag = 'scoped memory for tpu_custom_call.1']
    #allocation5 [shape = 'u8[176128]{0}', space=vmem, size = 0x2b000, scoped, tag = 'input window, operand 1, single buffered']
    #allocation6 [shape = 's32[1]{0}', space=sflag, size = 0x4, scoped, tag = 'scoped memory for tpu_custom_call.1']
    #allocation7 [shape = 'u8[4096]{0}', space=vmem, size = 0x1000, scoped, tag = 'output window, operand 0, single buffered']
    %7 = vsyncpa [#allocation3], 0
    %8 = vsyncpa [#allocation6], 0
    %9 = vsyncpa [#allocation4], 0
    // Predicated region
    $region2: #{tpu_custom_call.1} parent=1 // pred_check
      _
    $region3: #{tpu_custom_call.1} parent=1 // pred_check_branch
      %11 = sbr.rel (0) target = $region5
    $region4: #{tpu_custom_call.1} parent=1 // pred_region
      %s13 = ssub.s32 1024, 1024
      %14 = vsyncadd [#allocation3], %s13
      %s15 = sshll.u32 [#allocation2], 4
      %s16 = int_to_ptr.vmem [resolvable:$true] %s15
      %21 = dma.hbm_to_vmem [thread:$0]  %s0, 1024, %s16, [#allocation3], 128, 128, 8
    $region5: #{tpu_custom_call.1} parent=1 // pred_fallthru
      _
    // Predicated region
    $region6: #{tpu_custom_call.1} parent=1 // pred_check
      _
    $region7: #{tpu_custom_call.1} parent=1 // pred_check_branch
      %23 = sbr.rel (0) target = $region9
    $region8: #{tpu_custom_call.1} parent=1 // pred_region
      %s25 = ssub.s32 5504, 5504
      %26 = vsyncadd [#allocation6], %s25
      %s27 = sshll.u32 [#allocation5], 4
      %s28 = int_to_ptr.vmem [resolvable:$true] %s27
      %33 = dma.hbm_to_vmem [thread:$0]  %s1, 5504, %s28, [#allocation6], 128, 128, 8
    $region9: #{tpu_custom_call.1} parent=1 // pred_fallthru
      _
    // Predicated region
    $region10: #{tpu_custom_call.1} parent=1 // pred_check
      _
    $region11: #{tpu_custom_call.1} parent=1 // pred_check_branch
      %35 = sbr.rel (0) target = $region13
    $region12: #{tpu_custom_call.1} parent=1 // pred_region
      %36 = dma.done [#allocation3], 1024
    $region13: #{tpu_custom_call.1} parent=1 // pred_fallthru
      _
    // Predicated region
    $region14: #{tpu_custom_call.1} parent=1 // pred_check
      _
    $region15: #{tpu_custom_call.1} parent=1 // pred_check_branch
      %38 = sbr.rel (0) target = $region17
    $region16: #{tpu_custom_call.1} parent=1 // pred_region
      %39 = dma.done [#allocation6], 5504
    $region17: #{tpu_custom_call.1} parent=1 // pred_fallthru
      _
    %v40 = vld [vmem:[#allocation5] sm:$0xff]
    %v41 = vld [vmem:[#allocation5 + $0x8] sm:$0xff]
    %v42 = vld [vmem:[#allocation5 + $0x10] sm:$0xff]
    %v43 = vld [vmem:[#allocation5 + $0x18] sm:$0xff]
    %v44 = vld [vmem:[#allocation2] sm:$0xff]
    %vm45 = vcmask 261120
    %v47 = vsel %vm45, 0.0, 0
    %49 = vmatprep.subr.mxu0 0.0
    %50 = vmatpush1.msra.mxu0 0.0
    %51 = vmatprep.subr.mxu0 0.0
    %52 = vmatpush1.msra.mxu0 0.0
    %53 = vmatprep.subr.mxu0 0.0
    %54 = vmatpush1.msra.mxu0 0.0
    %55 = vmatprep.subr.mxu0 0.0
    %56 = vmatpush1.msra.mxu0 0.0
    %57 = vmatprep.subr.mxu0 0.0
    %58 = vmatpush1.msra.mxu0 0.0
    %59 = vmatprep.subr.mxu0 0.0
    %60 = vmatpush1.msra.mxu0 0.0
    %61 = vmatprep.subr.mxu0 0.0
    %62 = vmatpush1.msra.mxu0 0.0
    %63 = vmatprep.subr.mxu0 0.0
    %64 = vmatpush1.msra.mxu0 0.0
    %65 = vmatprep.subr.mxu0 0.0
    %66 = vmatpush1.msra.mxu0 0.0
    %67 = vmatprep.subr.mxu0 0.0
    %68 = vmatpush1.msra.mxu0 0.0
    %69 = vmatprep.subr.mxu0 0.0
    %70 = vmatpush1.msra.mxu0 0.0
    %71 = vmatprep.subr.mxu0 0.0
    %72 = vmatpush1.msra.mxu0 0.0
    %73 = vmatprep.subr.mxu0 0.0
    %74 = vmatpush1.msra.mxu0 %v43
    %75 = vmatprep.subr.mxu0 0.0
    %76 = vmatpush1.msra.mxu0 %v42
    %77 = vmatprep.subr.mxu0 0.0
    %78 = vmatpush1.msra.mxu0 %v41
    %79 = vmatprep.subr.mxu0 0.0
    %80 = vmatpush1.msra.mxu0 %v40
    %81 = vmatprep.subr.mxu0 0.0
    %82 = vmatpush2.msra.mxu0 0.0
    %83 = vmatprep.subr.mxu0 0.0
    %84 = vmatpush2.msra.mxu0 0.0
    %85 = vmatprep.subr.mxu0 0.0
    %86 = vmatpush2.msra.mxu0 0.0
    %87 = vmatprep.subr.mxu0 0.0
    %88 = vmatpush2.msra.mxu0 0.0
    %89 = vmatprep.subr.mxu0 0.0
    %90 = vmatpush2.msra.mxu0 0.0
    %91 = vmatprep.subr.mxu0 0.0
    %92 = vmatpush2.msra.mxu0 0.0
    %93 = vmatprep.subr.mxu0 0.0
    %94 = vmatpush2.msra.mxu0 0.0
    %95 = vmatprep.subr.mxu0 0.0
    %96 = vmatpush2.msra.mxu0 0.0
    %97 = vmatprep.subr.mxu0 0.0
    %98 = vmatpush2.msra.mxu0 0.0
    %99 = vmatprep.subr.mxu0 0.0
    %100 = vmatpush2.msra.mxu0 0.0
    %101 = vmatprep.subr.mxu0 0.0
    %102 = vmatpush2.msra.mxu0 0.0
    %103 = vmatprep.subr.mxu0 0.0
    %104 = vmatpush2.msra.mxu0 0.0
    %105 = vmatprep.subr.mxu0 0.0
    %106 = vmatpush2.msra.mxu0 0.0
    %107 = vmatprep.subr.mxu0 0.0
    %108 = vmatpush2.msra.mxu0 0.0
    %109 = vmatprep.subr.mxu0 0.0
    %110 = vmatpush2.msra.mxu0 0.0
    %111 = vmatprep.subr.mxu0 0.0
    %112 = vmatpush2.msra.mxu0 0.0
    %113 = vmatprep.mubr.f32.mxu0 0.0
    %114 = vmatmul.mubr.f32.gmra.mxu0 %v47
    %v115 = vpop.f32.mrf.mxu0
    %v116 = vadd.f32 0.0, %v115
    %v117 = vpop.f32.mrf.mxu0
    %118 = vdwg.mxu0
    %v119 = vadd.f32 %v44, %v116
    %v120 = vxor.u32 %v119, 2147483648
    %v121 = vmul.f32 %v120, 1.442695
    %v122 = vpow.pop %v121
    %v123 = vadd.f32 %v122, 1.0
    %v124 = vrcp.pop %v123
    %v125 = vmul.f32 1.0, %v124
    %v126 = vmul.f32 %v125, 2.0
    %v127 = vsub.f32 %v126, 1.0
    %v128 = vmul.f32 %v125, 0.0
    %130 = vrot.lane.b32.xlu0 %v127, 64
    %v131 = vpop.permute.xlu0 %130
    %v133 = vmul.f32 %v125, %v131
    %135 = vrot.lane.b32.xlu0 %v133, 32
    %v136 = vpop.permute.xlu0 %135
    %v138 = vadd.f32 %v128, %v136
    %v139 = vtanh.pop %v138
    %141 = vrot.lane.b32.xlu0 %v139, 64
    %v142 = vpop.permute.xlu0 %141
    %v144 = vmul.f32 %v125, %v142
    %s145 = scalar_lea.vmem [#allocation2], 8
    %v146 = vld [vmem:[%s145] sm:$0xff]
    %148 = vrot.lane.b32.xlu0 %v144, 32
    %v149 = vpop.permute.xlu0 %148
    %v150 = vsel %vm45, %v149, 0
    %152 = vmatprep.subr.mxu0 0.0
    %153 = vmatpush1.msra.mxu0 0.0
    %154 = vmatprep.subr.mxu0 0.0
    %155 = vmatpush1.msra.mxu0 0.0
    %156 = vmatprep.subr.mxu0 0.0
    %157 = vmatpush1.msra.mxu0 0.0
    %158 = vmatprep.subr.mxu0 0.0
    %159 = vmatpush1.msra.mxu0 0.0
    %160 = vmatprep.subr.mxu0 0.0
    %161 = vmatpush1.msra.mxu0 0.0
    %162 = vmatprep.subr.mxu0 0.0
    %163 = vmatpush1.msra.mxu0 0.0
    %164 = vmatprep.subr.mxu0 0.0
    %165 = vmatpush1.msra.mxu0 0.0
    %166 = vmatprep.subr.mxu0 0.0
    %167 = vmatpush1.msra.mxu0 0.0
    %168 = vmatprep.subr.mxu0 0.0
    %169 = vmatpush1.msra.mxu0 0.0
    %170 = vmatprep.subr.mxu0 0.0
    %171 = vmatpush1.msra.mxu0 0.0
    %172 = vmatprep.subr.mxu0 0.0
    %173 = vmatpush1.msra.mxu0 0.0
    %174 = vmatprep.subr.mxu0 0.0
    %175 = vmatpush1.msra.mxu0 0.0
    %176 = vmatprep.subr.mxu0 0.0
    %177 = vmatpush1.msra.mxu0 %v43
    %178 = vmatprep.subr.mxu0 0.0
    %179 = vmatpush1.msra.mxu0 %v42
    %180 = vmatprep.subr.mxu0 0.0
    %181 = vmatpush1.msra.mxu0 %v41
    %182 = vmatprep.subr.mxu0 0.0
    %183 = vmatpush1.msra.mxu0 %v40
    %184 = vmatprep.subr.mxu0 0.0
    %185 = vmatpush2.msra.mxu0 0.0
    %186 = vmatprep.subr.mxu0 0.0
    %187 = vmatpush2.msra.mxu0 0.0
    %188 = vmatprep.subr.mxu0 0.0
    %189 = vmatpush2.msra.mxu0 0.0
    %190 = vmatprep.subr.mxu0 0.0
    %191 = vmatpush2.msra.mxu0 0.0
    %192 = vmatprep.subr.mxu0 0.0
    %193 = vmatpush2.msra.mxu0 0.0
    %194 = vmatprep.subr.mxu0 0.0
    %195 = vmatpush2.msra.mxu0 0.0
    %196 = vmatprep.subr.mxu0 0.0
    %197 = vmatpush2.msra.mxu0 0.0
    %198 = vmatprep.subr.mxu0 0.0
    %199 = vmatpush2.msra.mxu0 0.0
    %200 = vmatprep.subr.mxu0 0.0
    %201 = vmatpush2.msra.mxu0 0.0
    %202 = vmatprep.subr.mxu0 0.0
    %203 = vmatpush2.msra.mxu0 0.0
    %204 = vmatprep.subr.mxu0 0.0
    %205 = vmatpush2.msra.mxu0 0.0
    %206 = vmatprep.subr.mxu0 0.0
    %207 = vmatpush2.msra.mxu0 0.0
    %208 = vmatprep.subr.mxu0 0.0
    %209 = vmatpush2.msra.mxu0 0.0
    %210 = vmatprep.subr.mxu0 0.0
    %211 = vmatpush2.msra.mxu0 0.0
    %212 = vmatprep.subr.mxu0 0.0
    %213 = vmatpush2.msra.mxu0 0.0
    %214 = vmatprep.subr.mxu0 0.0
    %215 = vmatpush2.msra.mxu0 0.0
    %216 = vmatprep.mubr.f32.mxu0 0.0
    %217 = vmatmul.mubr.f32.gmra.mxu0 %v150
    %v218 = vpop.f32.mrf.mxu0
    %v219 = vadd.f32 0.0, %v218
    %v220 = vpop.f32.mrf.mxu0
    %221 = vdwg.mxu0
    %v222 = vadd.f32 %v146, %v219
    %v223 = vxor.u32 %v222, 2147483648
    %v224 = vmul.f32 %v223, 1.442695
    %v225 = vpow.pop %v224
    %v226 = vadd.f32 %v225, 1.0
    %v227 = vrcp.pop %v226
    %v228 = vmul.f32 1.0, %v227
    %v229 = vmul.f32 %v228, 2.0
    %v230 = vsub.f32 %v229, 1.0
    %v231 = vmul.f32 %v228, %v138
    %233 = vrot.lane.b32.xlu0 %v230, 64
    %v234 = vpop.permute.xlu0 %233
    %v236 = vmul.f32 %v228, %v234
    %238 = vrot.lane.b32.xlu0 %v236, 32
    %v239 = vpop.permute.xlu0 %238
    %v241 = vadd.f32 %v231, %v239
    %v242 = vtanh.pop %v241
    %244 = vrot.lane.b32.xlu0 %v242, 64
    %v245 = vpop.permute.xlu0 %244
    %v247 = vmul.f32 %v228, %v245
    %s248 = scalar_lea.vmem [#allocation2], 16
    %v249 = vld [vmem:[%s248] sm:$0xff]
    %251 = vrot.lane.b32.xlu0 %v247, 32
    %v252 = vpop.permute.xlu0 %251
    %v253 = vsel %vm45, %v252, 0
    %255 = vmatprep.subr.mxu0 0.0
    %256 = vmatpush1.msra.mxu0 0.0
    %257 = vmatprep.subr.mxu0 0.0
    %258 = vmatpush1.msra.mxu0 0.0
    %259 = vmatprep.subr.mxu0 0.0
    %260 = vmatpush1.msra.mxu0 0.0
    %261 = vmatprep.subr.mxu0 0.0
    %262 = vmatpush1.msra.mxu0 0.0
    %263 = vmatprep.subr.mxu0 0.0
    %264 = vmatpush1.msra.mxu0 0.0
    %265 = vmatprep.subr.mxu0 0.0
    %266 = vmatpush1.msra.mxu0 0.0
    %267 = vmatprep.subr.mxu0 0.0
    %268 = vmatpush1.msra.mxu0 0.0
    %269 = vmatprep.subr.mxu0 0.0
    %270 = vmatpush1.msra.mxu0 0.0
    %271 = vmatprep.subr.mxu0 0.0
    %272 = vmatpush1.msra.mxu0 0.0
    %273 = vmatprep.subr.mxu0 0.0
    %274 = vmatpush1.msra.mxu0 0.0
    %275 = vmatprep.subr.mxu0 0.0
    %276 = vmatpush1.msra.mxu0 0.0
    %277 = vmatprep.subr.mxu0 0.0
    %278 = vmatpush1.msra.mxu0 0.0
    %279 = vmatprep.subr.mxu0 0.0
    %280 = vmatpush1.msra.mxu0 %v43
    %281 = vmatprep.subr.mxu0 0.0
    %282 = vmatpush1.msra.mxu0 %v42
    %283 = vmatprep.subr.mxu0 0.0
    %284 = vmatpush1.msra.mxu0 %v41
    %285 = vmatprep.subr.mxu0 0.0
    %286 = vmatpush1.msra.mxu0 %v40
    %287 = vmatprep.subr.mxu0 0.0
    %288 = vmatpush2.msra.mxu0 0.0
    %289 = vmatprep.subr.mxu0 0.0
    %290 = vmatpush2.msra.mxu0 0.0
    %291 = vmatprep.subr.mxu0 0.0
    %292 = vmatpush2.msra.mxu0 0.0
    %293 = vmatprep.subr.mxu0 0.0
    %294 = vmatpush2.msra.mxu0 0.0
    %295 = vmatprep.subr.mxu0 0.0
    %296 = vmatpush2.msra.mxu0 0.0
    %297 = vmatprep.subr.mxu0 0.0
    %298 = vmatpush2.msra.mxu0 0.0
    %299 = vmatprep.subr.mxu0 0.0
    %300 = vmatpush2.msra.mxu0 0.0
    %301 = vmatprep.subr.mxu0 0.0
    %302 = vmatpush2.msra.mxu0 0.0
    %303 = vmatprep.subr.mxu0 0.0
    %304 = vmatpush2.msra.mxu0 0.0
    %305 = vmatprep.subr.mxu0 0.0
    %306 = vmatpush2.msra.mxu0 0.0
    %307 = vmatprep.subr.mxu0 0.0
    %308 = vmatpush2.msra.mxu0 0.0
    %309 = vmatprep.subr.mxu0 0.0
    %310 = vmatpush2.msra.mxu0 0.0
    %311 = vmatprep.subr.mxu0 0.0
    %312 = vmatpush2.msra.mxu0 0.0
    %313 = vmatprep.subr.mxu0 0.0
    %314 = vmatpush2.msra.mxu0 0.0
    %315 = vmatprep.subr.mxu0 0.0
    %316 = vmatpush2.msra.mxu0 0.0
    %317 = vmatprep.subr.mxu0 0.0
    %318 = vmatpush2.msra.mxu0 0.0
    %319 = vmatprep.mubr.f32.mxu0 0.0
    %320 = vmatmul.mubr.f32.gmra.mxu0 %v253
    %v321 = vpop.f32.mrf.mxu0
    %v322 = vadd.f32 0.0, %v321
    %v323 = vpop.f32.mrf.mxu0
    %324 = vdwg.mxu0
    %v325 = vadd.f32 %v249, %v322
    %v326 = vxor.u32 %v325, 2147483648
    %v327 = vmul.f32 %v326, 1.442695
    %v328 = vpow.pop %v327
    %v329 = vadd.f32 %v328, 1.0
    %v330 = vrcp.pop %v329
    %v331 = vmul.f32 1.0, %v330
    %v332 = vmul.f32 %v331, 2.0
    %v333 = vsub.f32 %v332, 1.0
    %v334 = vmul.f32 %v331, %v241
    %336 = vrot.lane.b32.xlu0 %v333, 64
    %v337 = vpop.permute.xlu0 %336
    %v339 = vmul.f32 %v331, %v337
    %341 = vrot.lane.b32.xlu0 %v339, 32
    %v342 = vpop.permute.xlu0 %341
    %v344 = vadd.f32 %v334, %v342
    %v345 = vtanh.pop %v344
    %347 = vrot.lane.b32.xlu0 %v345, 64
    %v348 = vpop.permute.xlu0 %347
    %v350 = vmul.f32 %v331, %v348
    %s351 = scalar_lea.vmem [#allocation2], 24
    %v352 = vld [vmem:[%s351] sm:$0xff]
    %354 = vrot.lane.b32.xlu0 %v350, 32
    %v355 = vpop.permute.xlu0 %354
    %v356 = vsel %vm45, %v355, 0
    %358 = vmatprep.subr.mxu0 0.0
    %359 = vmatpush1.msra.mxu0 0.0
    %360 = vmatprep.subr.mxu0 0.0
    %361 = vmatpush1.msra.mxu0 0.0
    %362 = vmatprep.subr.mxu0 0.0
    %363 = vmatpush1.msra.mxu0 0.0
    %364 = vmatprep.subr.mxu0 0.0
    %365 = vmatpush1.msra.mxu0 0.0
    %366 = vmatprep.subr.mxu0 0.0
    %367 = vmatpush1.msra.mxu0 0.0
    %368 = vmatprep.subr.mxu0 0.0
    %369 = vmatpush1.msra.mxu0 0.0
    %370 = vmatprep.subr.mxu0 0.0
    %371 = vmatpush1.msra.mxu0 0.0
    %372 = vmatprep.subr.mxu0 0.0
    %373 = vmatpush1.msra.mxu0 0.0
    %374 = vmatprep.subr.mxu0 0.0
    %375 = vmatpush1.msra.mxu0 0.0
    %376 = vmatprep.subr.mxu0 0.0
    %377 = vmatpush1.msra.mxu0 0.0
    %378 = vmatprep.subr.mxu0 0.0
    %379 = vmatpush1.msra.mxu0 0.0
    %380 = vmatprep.subr.mxu0 0.0
    %381 = vmatpush1.msra.mxu0 0.0
    %382 = vmatprep.subr.mxu0 0.0
    %383 = vmatpush1.msra.mxu0 %v43
    %384 = vmatprep.subr.mxu0 0.0
    %385 = vmatpush1.msra.mxu0 %v42
    %386 = vmatprep.subr.mxu0 0.0
    %387 = vmatpush1.msra.mxu0 %v41
    %388 = vmatprep.subr.mxu0 0.0
    %389 = vmatpush1.msra.mxu0 %v40
    %390 = vmatprep.subr.mxu0 0.0
    %391 = vmatpush2.msra.mxu0 0.0
    %392 = vmatprep.subr.mxu0 0.0
    %393 = vmatpush2.msra.mxu0 0.0
    %394 = vmatprep.subr.mxu0 0.0
    %395 = vmatpush2.msra.mxu0 0.0
    %396 = vmatprep.subr.mxu0 0.0
    %397 = vmatpush2.msra.mxu0 0.0
    %398 = vmatprep.subr.mxu0 0.0
    %399 = vmatpush2.msra.mxu0 0.0
    %400 = vmatprep.subr.mxu0 0.0
    %401 = vmatpush2.msra.mxu0 0.0
    %402 = vmatprep.subr.mxu0 0.0
    %403 = vmatpush2.msra.mxu0 0.0
    %404 = vmatprep.subr.mxu0 0.0
    %405 = vmatpush2.msra.mxu0 0.0
    %406 = vmatprep.subr.mxu0 0.0
    %407 = vmatpush2.msra.mxu0 0.0
    %408 = vmatprep.subr.mxu0 0.0
    %409 = vmatpush2.msra.mxu0 0.0
    %410 = vmatprep.subr.mxu0 0.0
    %411 = vmatpush2.msra.mxu0 0.0
    %412 = vmatprep.subr.mxu0 0.0
    %413 = vmatpush2.msra.mxu0 0.0
    %414 = vmatprep.subr.mxu0 0.0
    %415 = vmatpush2.msra.mxu0 0.0
    %416 = vmatprep.subr.mxu0 0.0
    %417 = vmatpush2.msra.mxu0 0.0
    %418 = vmatprep.subr.mxu0 0.0
    %419 = vmatpush2.msra.mxu0 0.0
    %420 = vmatprep.subr.mxu0 0.0
    %421 = vmatpush2.msra.mxu0 0.0
    %422 = vmatprep.mubr.f32.mxu0 0.0
    %423 = vmatmul.mubr.f32.gmra.mxu0 %v356
    %v424 = vpop.f32.mrf.mxu0
    %v425 = vadd.f32 0.0, %v424
    %v426 = vpop.f32.mrf.mxu0
    %427 = vdwg.mxu0
    %v428 = vadd.f32 %v352, %v425
    %v429 = vxor.u32 %v428, 2147483648
    %v430 = vmul.f32 %v429, 1.442695
    %v431 = vpow.pop %v430
    %v432 = vadd.f32 %v431, 1.0
    %v433 = vrcp.pop %v432
    %v434 = vmul.f32 1.0, %v433
    %v435 = vmul.f32 %v434, 2.0
    %v436 = vsub.f32 %v435, 1.0
    %v437 = vmul.f32 %v434, %v344
    %439 = vrot.lane.b32.xlu0 %v436, 64
    %v440 = vpop.permute.xlu0 %439
    %v442 = vmul.f32 %v434, %v440
    %444 = vrot.lane.b32.xlu0 %v442, 32
    %v445 = vpop.permute.xlu0 %444
    %v447 = vadd.f32 %v437, %v445
    %v448 = vtanh.pop %v447
    %450 = vrot.lane.b32.xlu0 %v448, 64
    %v451 = vpop.permute.xlu0 %450
    %v453 = vmul.f32 %v434, %v451
    %s454 = scalar_lea.vmem [#allocation2], 32
    %v455 = vld [vmem:[%s454] sm:$0xff]
    %457 = vrot.lane.b32.xlu0 %v453, 32
    %v458 = vpop.permute.xlu0 %457
    %v459 = vsel %vm45, %v458, 0
    %461 = vmatprep.subr.mxu0 0.0
    %462 = vmatpush1.msra.mxu0 0.0
    %463 = vmatprep.subr.mxu0 0.0
    %464 = vmatpush1.msra.mxu0 0.0
    %465 = vmatprep.subr.mxu0 0.0
    %466 = vmatpush1.msra.mxu0 0.0
    %467 = vmatprep.subr.mxu0 0.0
    %468 = vmatpush1.msra.mxu0 0.0
    %469 = vmatprep.subr.mxu0 0.0
    %470 = vmatpush1.msra.mxu0 0.0
    %471 = vmatprep.subr.mxu0 0.0
    %472 = vmatpush1.msra.mxu0 0.0
    %473 = vmatprep.subr.mxu0 0.0
    %474 = vmatpush1.msra.mxu0 0.0
    %475 = vmatprep.subr.mxu0 0.0
    %476 = vmatpush1.msra.mxu0 0.0
    %477 = vmatprep.subr.mxu0 0.0
    %478 = vmatpush1.msra.mxu0 0.0
    %479 = vmatprep.subr.mxu0 0.0
    %480 = vmatpush1.msra.mxu0 0.0
    %481 = vmatprep.subr.mxu0 0.0
    %482 = vmatpush1.msra.mxu0 0.0
    %483 = vmatprep.subr.mxu0 0.0
    %484 = vmatpush1.msra.mxu0 0.0
    %485 = vmatprep.subr.mxu0 0.0
    %486 = vmatpush1.msra.mxu0 %v43
    %487 = vmatprep.subr.mxu0 0.0
    %488 = vmatpush1.msra.mxu0 %v42
    %489 = vmatprep.subr.mxu0 0.0
    %490 = vmatpush1.msra.mxu0 %v41
    %491 = vmatprep.subr.mxu0 0.0
    %492 = vmatpush1.msra.mxu0 %v40
    %493 = vmatprep.subr.mxu0 0.0
    %494 = vmatpush2.msra.mxu0 0.0
    %495 = vmatprep.subr.mxu0 0.0
    %496 = vmatpush2.msra.mxu0 0.0
    %497 = vmatprep.subr.mxu0 0.0
    %498 = vmatpush2.msra.mxu0 0.0
    %499 = vmatprep.subr.mxu0 0.0
    %500 = vmatpush2.msra.mxu0 0.0
    %501 = vmatprep.subr.mxu0 0.0
    %502 = vmatpush2.msra.mxu0 0.0
    %503 = vmatprep.subr.mxu0 0.0
    %504 = vmatpush2.msra.mxu0 0.0
    %505 = vmatprep.subr.mxu0 0.0
    %506 = vmatpush2.msra.mxu0 0.0
    %507 = vmatprep.subr.mxu0 0.0
    %508 = vmatpush2.msra.mxu0 0.0
    %509 = vmatprep.subr.mxu0 0.0
    %510 = vmatpush2.msra.mxu0 0.0
    %511 = vmatprep.subr.mxu0 0.0
    %512 = vmatpush2.msra.mxu0 0.0
    %513 = vmatprep.subr.mxu0 0.0
    %514 = vmatpush2.msra.mxu0 0.0
    %515 = vmatprep.subr.mxu0 0.0
    %516 = vmatpush2.msra.mxu0 0.0
    %517 = vmatprep.subr.mxu0 0.0
    %518 = vmatpush2.msra.mxu0 0.0
    %519 = vmatprep.subr.mxu0 0.0
    %520 = vmatpush2.msra.mxu0 0.0
    %521 = vmatprep.subr.mxu0 0.0
    %522 = vmatpush2.msra.mxu0 0.0
    %523 = vmatprep.subr.mxu0 0.0
    %524 = vmatpush2.msra.mxu0 0.0
    %525 = vmatprep.mubr.f32.mxu0 0.0
    %526 = vmatmul.mubr.f32.gmra.mxu0 %v459
    %v527 = vpop.f32.mrf.mxu0
    %v528 = vadd.f32 0.0, %v527
    %v529 = vpop.f32.mrf.mxu0
    %530 = vdwg.mxu0
    %v531 = vadd.f32 %v455, %v528
    %v532 = vxor.u32 %v531, 2147483648
    %v533 = vmul.f32 %v532, 1.442695
    %v534 = vpow.pop %v533
    %v535 = vadd.f32 %v534, 1.0
    %v536 = vrcp.pop %v535
    %v537 = vmul.f32 1.0, %v536
    %v538 = vmul.f32 %v537, 2.0
    %v539 = vsub.f32 %v538, 1.0
    %v540 = vmul.f32 %v537, %v447
    %542 = vrot.lane.b32.xlu0 %v539, 64
    %v543 = vpop.permute.xlu0 %542
    %v545 = vmul.f32 %v537, %v543
    %547 = vrot.lane.b32.xlu0 %v545, 32
    %v548 = vpop.permute.xlu0 %547
    %v550 = vadd.f32 %v540, %v548
    %v551 = vtanh.pop %v550
    %553 = vrot.lane.b32.xlu0 %v551, 64
    %v554 = vpop.permute.xlu0 %553
    %v556 = vmul.f32 %v537, %v554
    %s557 = scalar_lea.vmem [#allocation2], 40
    %v558 = vld [vmem:[%s557] sm:$0xff]
    %560 = vrot.lane.b32.xlu0 %v556, 32
    %v561 = vpop.permute.xlu0 %560
    %v562 = vsel %vm45, %v561, 0
    %564 = vmatprep.subr.mxu0 0.0
    %565 = vmatpush1.msra.mxu0 0.0
    %566 = vmatprep.subr.mxu0 0.0
    %567 = vmatpush1.msra.mxu0 0.0
    %568 = vmatprep.subr.mxu0 0.0
    %569 = vmatpush1.msra.mxu0 0.0
    %570 = vmatprep.subr.mxu0 0.0
    %571 = vmatpush1.msra.mxu0 0.0
    %572 = vmatprep.subr.mxu0 0.0
    %573 = vmatpush1.msra.mxu0 0.0
    %574 = vmatprep.subr.mxu0 0.0
    %575 = vmatpush1.msra.mxu0 0.0
    %576 = vmatprep.subr.mxu0 0.0
    %577 = vmatpush1.msra.mxu0 0.0
    %578 = vmatprep.subr.mxu0 0.0
    %579 = vmatpush1.msra.mxu0 0.0
    %580 = vmatprep.subr.mxu0 0.0
    %581 = vmatpush1.msra.mxu0 0.0
    %582 = vmatprep.subr.mxu0 0.0
    %583 = vmatpush1.msra.mxu0 0.0
    %584 = vmatprep.subr.mxu0 0.0
    %585 = vmatpush1.msra.mxu0 0.0
    %586 = vmatprep.subr.mxu0 0.0
    %587 = vmatpush1.msra.mxu0 0.0
    %588 = vmatprep.subr.mxu0 0.0
    %589 = vmatpush1.msra.mxu0 %v43
    %590 = vmatprep.subr.mxu0 0.0
    %591 = vmatpush1.msra.mxu0 %v42
    %592 = vmatprep.subr.mxu0 0.0
    %593 = vmatpush1.msra.mxu0 %v41
    %594 = vmatprep.subr.mxu0 0.0
    %595 = vmatpush1.msra.mxu0 %v40
    %596 = vmatprep.subr.mxu0 0.0
    %597 = vmatpush2.msra.mxu0 0.0
    %598 = vmatprep.subr.mxu0 0.0
    %599 = vmatpush2.msra.mxu0 0.0
    %600 = vmatprep.subr.mxu0 0.0
    %601 = vmatpush2.msra.mxu0 0.0
    %602 = vmatprep.subr.mxu0 0.0
    %603 = vmatpush2.msra.mxu0 0.0
    %604 = vmatprep.subr.mxu0 0.0
    %605 = vmatpush2.msra.mxu0 0.0
    %606 = vmatprep.subr.mxu0 0.0
    %607 = vmatpush2.msra.mxu0 0.0
    %608 = vmatprep.subr.mxu0 0.0
    %609 = vmatpush2.msra.mxu0 0.0
    %610 = vmatprep.subr.mxu0 0.0
    %611 = vmatpush2.msra.mxu0 0.0
    %612 = vmatprep.subr.mxu0 0.0
    %613 = vmatpush2.msra.mxu0 0.0
    %614 = vmatprep.subr.mxu0 0.0
    %615 = vmatpush2.msra.mxu0 0.0
    %616 = vmatprep.subr.mxu0 0.0
    %617 = vmatpush2.msra.mxu0 0.0
    %618 = vmatprep.subr.mxu0 0.0
    %619 = vmatpush2.msra.mxu0 0.0
    %620 = vmatprep.subr.mxu0 0.0
    %621 = vmatpush2.msra.mxu0 0.0
    %622 = vmatprep.subr.mxu0 0.0
    %623 = vmatpush2.msra.mxu0 0.0
    %624 = vmatprep.subr.mxu0 0.0
    %625 = vmatpush2.msra.mxu0 0.0
    %626 = vmatprep.subr.mxu0 0.0
    %627 = vmatpush2.msra.mxu0 0.0
    %628 = vmatprep.mubr.f32.mxu0 0.0
    %629 = vmatmul.mubr.f32.gmra.mxu0 %v562
    %v630 = vpop.f32.mrf.mxu0
    %v631 = vadd.f32 0.0, %v630
    %v632 = vpop.f32.mrf.mxu0
    %633 = vdwg.mxu0
    %v634 = vadd.f32 %v558, %v631
    %v635 = vxor.u32 %v634, 2147483648
    %v636 = vmul.f32 %v635, 1.442695
    %v637 = vpow.pop %v636
    %v638 = vadd.f32 %v637, 1.0
    %v639 = vrcp.pop %v638
    %v640 = vmul.f32 1.0, %v639
    %v641 = vmul.f32 %v640, 2.0
    %v642 = vsub.f32 %v641, 1.0
    %v643 = vmul.f32 %v640, %v550
    %645 = vrot.lane.b32.xlu0 %v642, 64
    %v646 = vpop.permute.xlu0 %645
    %v648 = vmul.f32 %v640, %v646
    %650 = vrot.lane.b32.xlu0 %v648, 32
    %v651 = vpop.permute.xlu0 %650
    %v653 = vadd.f32 %v643, %v651
    %v654 = vtanh.pop %v653
    %656 = vrot.lane.b32.xlu0 %v654, 64
    %v657 = vpop.permute.xlu0 %656
    %v659 = vmul.f32 %v640, %v657
    %s660 = scalar_lea.vmem [#allocation2], 48
    %v661 = vld [vmem:[%s660] sm:$0xff]
    %663 = vrot.lane.b32.xlu0 %v659, 32
    %v664 = vpop.permute.xlu0 %663
    %v665 = vsel %vm45, %v664, 0
    %667 = vmatprep.subr.mxu0 0.0
    %668 = vmatpush1.msra.mxu0 0.0
    %669 = vmatprep.subr.mxu0 0.0
    %670 = vmatpush1.msra.mxu0 0.0
    %671 = vmatprep.subr.mxu0 0.0
    %672 = vmatpush1.msra.mxu0 0.0
    %673 = vmatprep.subr.mxu0 0.0
    %674 = vmatpush1.msra.mxu0 0.0
    %675 = vmatprep.subr.mxu0 0.0
    %676 = vmatpush1.msra.mxu0 0.0
    %677 = vmatprep.subr.mxu0 0.0
    %678 = vmatpush1.msra.mxu0 0.0
    %679 = vmatprep.subr.mxu0 0.0
    %680 = vmatpush1.msra.mxu0 0.0
    %681 = vmatprep.subr.mxu0 0.0
    %682 = vmatpush1.msra.mxu0 0.0
    %683 = vmatprep.subr.mxu0 0.0
    %684 = vmatpush1.msra.mxu0 0.0
    %685 = vmatprep.subr.mxu0 0.0
    %686 = vmatpush1.msra.mxu0 0.0
    %687 = vmatprep.subr.mxu0 0.0
    %688 = vmatpush1.msra.mxu0 0.0
    %689 = vmatprep.subr.mxu0 0.0
    %690 = vmatpush1.msra.mxu0 0.0
    %691 = vmatprep.subr.mxu0 0.0
    %692 = vmatpush1.msra.mxu0 %v43
    %693 = vmatprep.subr.mxu0 0.0
    %694 = vmatpush1.msra.mxu0 %v42
    %695 = vmatprep.subr.mxu0 0.0
    %696 = vmatpush1.msra.mxu0 %v41
    %697 = vmatprep.subr.mxu0 0.0
    %698 = vmatpush1.msra.mxu0 %v40
    %699 = vmatprep.subr.mxu0 0.0
    %700 = vmatpush2.msra.mxu0 0.0
    %701 = vmatprep.subr.mxu0 0.0
    %702 = vmatpush2.msra.mxu0 0.0
    %703 = vmatprep.subr.mxu0 0.0
    %704 = vmatpush2.msra.mxu0 0.0
    %705 = vmatprep.subr.mxu0 0.0
    %706 = vmatpush2.msra.mxu0 0.0
    %707 = vmatprep.subr.mxu0 0.0
    %708 = vmatpush2.msra.mxu0 0.0
    %709 = vmatprep.subr.mxu0 0.0
    %710 = vmatpush2.msra.mxu0 0.0
    %711 = vmatprep.subr.mxu0 0.0
    %712 = vmatpush2.msra.mxu0 0.0
    %713 = vmatprep.subr.mxu0 0.0
    %714 = vmatpush2.msra.mxu0 0.0
    %715 = vmatprep.subr.mxu0 0.0
    %716 = vmatpush2.msra.mxu0 0.0
    %717 = vmatprep.subr.mxu0 0.0
    %718 = vmatpush2.msra.mxu0 0.0
    %719 = vmatprep.subr.mxu0 0.0
    %720 = vmatpush2.msra.mxu0 0.0
    %721 = vmatprep.subr.mxu0 0.0
    %722 = vmatpush2.msra.mxu0 0.0
    %723 = vmatprep.subr.mxu0 0.0
    %724 = vmatpush2.msra.mxu0 0.0
    %725 = vmatprep.subr.mxu0 0.0
    %726 = vmatpush2.msra.mxu0 0.0
    %727 = vmatprep.subr.mxu0 0.0
    %728 = vmatpush2.msra.mxu0 0.0
    %729 = vmatprep.subr.mxu0 0.0
    %730 = vmatpush2.msra.mxu0 0.0
    %731 = vmatprep.mubr.f32.mxu0 0.0
    %732 = vmatmul.mubr.f32.gmra.mxu0 %v665
    %v733 = vpop.f32.mrf.mxu0
    %v734 = vadd.f32 0.0, %v733
    %v735 = vpop.f32.mrf.mxu0
    %736 = vdwg.mxu0
    %v737 = vadd.f32 %v661, %v734
    %v738 = vxor.u32 %v737, 2147483648
    %v739 = vmul.f32 %v738, 1.442695
    %v740 = vpow.pop %v739
    %v741 = vadd.f32 %v740, 1.0
    %v742 = vrcp.pop %v741
    %v743 = vmul.f32 1.0, %v742
    %v744 = vmul.f32 %v743, 2.0
    %v745 = vsub.f32 %v744, 1.0
    %v746 = vmul.f32 %v743, %v653
    %748 = vrot.lane.b32.xlu0 %v745, 64
    %v749 = vpop.permute.xlu0 %748
    %v751 = vmul.f32 %v743, %v749
    %753 = vrot.lane.b32.xlu0 %v751, 32
    %v754 = vpop.permute.xlu0 %753
    %v756 = vadd.f32 %v746, %v754
    %v757 = vtanh.pop %v756
    %759 = vrot.lane.b32.xlu0 %v757, 64
    %v760 = vpop.permute.xlu0 %759
    %v762 = vmul.f32 %v743, %v760
    %s763 = scalar_lea.vmem [#allocation2], 56
    %v764 = vld [vmem:[%s763] sm:$0xff]
    %766 = vrot.lane.b32.xlu0 %v762, 32
    %v767 = vpop.permute.xlu0 %766
    %v768 = vsel %vm45, %v767, 0
    %770 = vmatprep.subr.mxu0 0.0
    %771 = vmatpush1.msra.mxu0 0.0
    %772 = vmatprep.subr.mxu0 0.0
    %773 = vmatpush1.msra.mxu0 0.0
    %774 = vmatprep.subr.mxu0 0.0
    %775 = vmatpush1.msra.mxu0 0.0
    %776 = vmatprep.subr.mxu0 0.0
    %777 = vmatpush1.msra.mxu0 0.0
    %778 = vmatprep.subr.mxu0 0.0
    %779 = vmatpush1.msra.mxu0 0.0
    %780 = vmatprep.subr.mxu0 0.0
    %781 = vmatpush1.msra.mxu0 0.0
    %782 = vmatprep.subr.mxu0 0.0
    %783 = vmatpush1.msra.mxu0 0.0
    %784 = vmatprep.subr.mxu0 0.0
    %785 = vmatpush1.msra.mxu0 0.0
    %786 = vmatprep.subr.mxu0 0.0
    %787 = vmatpush1.msra.mxu0 0.0
    %788 = vmatprep.subr.mxu0 0.0
    %789 = vmatpush1.msra.mxu0 0.0
    %790 = vmatprep.subr.mxu0 0.0
    %791 = vmatpush1.msra.mxu0 0.0
    %792 = vmatprep.subr.mxu0 0.0
    %793 = vmatpush1.msra.mxu0 0.0
    %794 = vmatprep.subr.mxu0 0.0
    %795 = vmatpush1.msra.mxu0 %v43
    %796 = vmatprep.subr.mxu0 0.0
    %797 = vmatpush1.msra.mxu0 %v42
    %798 = vmatprep.subr.mxu0 0.0
    %799 = vmatpush1.msra.mxu0 %v41
    %800 = vmatprep.subr.mxu0 0.0
    %801 = vmatpush1.msra.mxu0 %v40
    %802 = vmatprep.subr.mxu0 0.0
    %803 = vmatpush2.msra.mxu0 0.0
    %804 = vmatprep.subr.mxu0 0.0
    %805 = vmatpush2.msra.mxu0 0.0
    %806 = vmatprep.subr.mxu0 0.0
    %807 = vmatpush2.msra.mxu0 0.0
    %808 = vmatprep.subr.mxu0 0.0
    %809 = vmatpush2.msra.mxu0 0.0
    %810 = vmatprep.subr.mxu0 0.0
    %811 = vmatpush2.msra.mxu0 0.0
    %812 = vmatprep.subr.mxu0 0.0
    %813 = vmatpush2.msra.mxu0 0.0
    %814 = vmatprep.subr.mxu0 0.0
    %815 = vmatpush2.msra.mxu0 0.0
    %816 = vmatprep.subr.mxu0 0.0
    %817 = vmatpush2.msra.mxu0 0.0
    %818 = vmatprep.subr.mxu0 0.0
    %819 = vmatpush2.msra.mxu0 0.0
    %820 = vmatprep.subr.mxu0 0.0
    %821 = vmatpush2.msra.mxu0 0.0
    %822 = vmatprep.subr.mxu0 0.0
    %823 = vmatpush2.msra.mxu0 0.0
    %824 = vmatprep.subr.mxu0 0.0
    %825 = vmatpush2.msra.mxu0 0.0
    %826 = vmatprep.subr.mxu0 0.0
    %827 = vmatpush2.msra.mxu0 0.0
    %828 = vmatprep.subr.mxu0 0.0
    %829 = vmatpush2.msra.mxu0 0.0
    %830 = vmatprep.subr.mxu0 0.0
    %831 = vmatpush2.msra.mxu0 0.0
    %832 = vmatprep.subr.mxu0 0.0
    %833 = vmatpush2.msra.mxu0 0.0
    %834 = vmatprep.mubr.f32.mxu0 0.0
    %835 = vmatmul.mubr.f32.gmra.mxu0 %v768
    %v836 = vpop.f32.mrf.mxu0
    %v837 = vadd.f32 0.0, %v836
    %v838 = vpop.f32.mrf.mxu0
    %839 = vdwg.mxu0
    %v840 = vadd.f32 %v764, %v837
    %v841 = vxor.u32 %v840, 2147483648
    %v842 = vmul.f32 %v841, 1.442695
    %v843 = vpow.pop %v842
    %v844 = vadd.f32 %v843, 1.0
    %v845 = vrcp.pop %v844
    %v846 = vmul.f32 1.0, %v845
    %v847 = vmul.f32 %v846, 2.0
    %v848 = vsub.f32 %v847, 1.0
    %v849 = vmul.f32 %v846, %v756
    %851 = vrot.lane.b32.xlu0 %v848, 64
    %v852 = vpop.permute.xlu0 %851
    %v854 = vmul.f32 %v846, %v852
    %856 = vrot.lane.b32.xlu0 %v854, 32
    %v857 = vpop.permute.xlu0 %856
    %v859 = vadd.f32 %v849, %v857
    %v860 = vtanh.pop %v859
    %862 = vrot.lane.b32.xlu0 %v860, 64
    %v863 = vpop.permute.xlu0 %862
    %v865 = vmul.f32 %v846, %v863
    %v866 = vld [vmem:[#allocation5 + $0x20] sm:$0xff]
    %v867 = vld [vmem:[#allocation5 + $0x28] sm:$0xff]
    %v868 = vld [vmem:[#allocation5 + $0x30] sm:$0xff]
    %v869 = vld [vmem:[#allocation5 + $0x38] sm:$0xff]
    %v870 = vld [vmem:[#allocation5 + $0x40] sm:$0x1]
    %v871 = vld [vmem:[#allocation5 + $0x48] sm:$0xff]
    %v872 = vld [vmem:[#allocation5 + $0x50] sm:$0xff]
    %v873 = vld [vmem:[#allocation5 + $0x58] sm:$0xff]
    %v874 = vld [vmem:[#allocation5 + $0x60] sm:$0xff]
    %v875 = vld [vmem:[#allocation5 + $0x68] sm:$0xff]
    %v876 = vld [vmem:[#allocation5 + $0x70] sm:$0xff]
    %v877 = vld [vmem:[#allocation5 + $0x78] sm:$0xff]
    %v878 = vld [vmem:[#allocation5 + $0x80] sm:$0xff]
    %v879 = vld [vmem:[#allocation5 + $0x88] sm:$0xff]
    %v880 = vld [vmem:[#allocation5 + $0x90] sm:$0xff]
    %v881 = vld [vmem:[#allocation5 + $0x98] sm:$0xff]
    %v882 = vld [vmem:[#allocation5 + $0xa0] sm:$0xff]
    %v883 = vld [vmem:[#allocation5 + $0xa8] sm:$0xff]
    %v884 = vld [vmem:[#allocation5 + $0xb0] sm:$0xff]
    %v885 = vld [vmem:[#allocation5 + $0xb8] sm:$0xff]
    %v886 = vld [vmem:[#allocation5 + $0xc0] sm:$0xff]
    %v887 = vld [vmem:[#allocation5 + $0xc8] sm:$0x1]
    %v888 = vld [vmem:[#allocation5 + $0xd0] sm:$0xff]
    %v889 = vld [vmem:[#allocation5 + $0xd8] sm:$0xff]
    %v890 = vld [vmem:[#allocation5 + $0xe0] sm:$0xff]
    %v891 = vld [vmem:[#allocation5 + $0xe8] sm:$0xff]
    %v892 = vld [vmem:[#allocation5 + $0xf0] sm:$0xff]
    %v893 = vld [vmem:[#allocation5 + $0xf8] sm:$0xff]
    %v894 = vld [vmem:[#allocation5 + $0x100] sm:$0xff]
    %v895 = vld [vmem:[#allocation5 + $0x108] sm:$0xff]
    %v896 = vld [vmem:[#allocation5 + $0x110] sm:$0xff]
    %v897 = vld [vmem:[#allocation5 + $0x118] sm:$0xff]
    %v898 = vld [vmem:[#allocation5 + $0x120] sm:$0xff]
    %v899 = vld [vmem:[#allocation5 + $0x128] sm:$0xff]
    %v900 = vld [vmem:[#allocation5 + $0x130] sm:$0xff]
    %v901 = vld [vmem:[#allocation5 + $0x138] sm:$0xff]
    %v902 = vld [vmem:[#allocation5 + $0x140] sm:$0xff]
    %v903 = vld [vmem:[#allocation5 + $0x148] sm:$0xff]
    %v904 = vld [vmem:[#allocation5 + $0x150] sm:$0x1]
    %v905 = vlaneseq
    %v906 = vshrl.u32 %v905, 7
    %v907 = vsub.s32 0, %v906
    %v908 = vrot.slane %v870, %v907
    %910 = vrot.lane.b32.xlu0 %v865, 32
    %v911 = vpop.permute.xlu0 %910
    %v912 = vsel %vm45, %v911, 0
    %914 = vmatprep.subr.mxu0 0.0
    %915 = vmatpush1.msra.mxu0 0.0
    %916 = vmatprep.subr.mxu0 0.0
    %917 = vmatpush1.msra.mxu0 0.0
    %918 = vmatprep.subr.mxu0 0.0
    %919 = vmatpush1.msra.mxu0 0.0
    %920 = vmatprep.subr.mxu0 0.0
    %921 = vmatpush1.msra.mxu0 0.0
    %922 = vmatprep.subr.mxu0 0.0
    %923 = vmatpush1.msra.mxu0 0.0
    %924 = vmatprep.subr.mxu0 0.0
    %925 = vmatpush1.msra.mxu0 0.0
    %926 = vmatprep.subr.mxu0 0.0
    %927 = vmatpush1.msra.mxu0 0.0
    %928 = vmatprep.subr.mxu0 0.0
    %929 = vmatpush1.msra.mxu0 0.0
    %930 = vmatprep.subr.mxu0 0.0
    %931 = vmatpush1.msra.mxu0 0.0
    %932 = vmatprep.subr.mxu0 0.0
    %933 = vmatpush1.msra.mxu0 0.0
    %934 = vmatprep.subr.mxu0 0.0
    %935 = vmatpush1.msra.mxu0 0.0
    %936 = vmatprep.subr.mxu0 0.0
    %937 = vmatpush1.msra.mxu0 0.0
    %938 = vmatprep.subr.mxu0 0.0
    %939 = vmatpush1.msra.mxu0 %v869
    %940 = vmatprep.subr.mxu0 0.0
    %941 = vmatpush1.msra.mxu0 %v868
    %942 = vmatprep.subr.mxu0 0.0
    %943 = vmatpush1.msra.mxu0 %v867
    %944 = vmatprep.subr.mxu0 0.0
    %945 = vmatpush1.msra.mxu0 %v866
    %946 = vmatprep.subr.mxu0 0.0
    %947 = vmatpush2.msra.mxu0 0.0
    %948 = vmatprep.subr.mxu0 0.0
    %949 = vmatpush2.msra.mxu0 0.0
    %950 = vmatprep.subr.mxu0 0.0
    %951 = vmatpush2.msra.mxu0 0.0
    %952 = vmatprep.subr.mxu0 0.0
    %953 = vmatpush2.msra.mxu0 0.0
    %954 = vmatprep.subr.mxu0 0.0
    %955 = vmatpush2.msra.mxu0 0.0
    %956 = vmatprep.subr.mxu0 0.0
    %957 = vmatpush2.msra.mxu0 0.0
    %958 = vmatprep.subr.mxu0 0.0
    %959 = vmatpush2.msra.mxu0 0.0
    %960 = vmatprep.subr.mxu0 0.0
    %961 = vmatpush2.msra.mxu0 0.0
    %962 = vmatprep.subr.mxu0 0.0
    %963 = vmatpush2.msra.mxu0 0.0
    %964 = vmatprep.subr.mxu0 0.0
    %965 = vmatpush2.msra.mxu0 0.0
    %966 = vmatprep.subr.mxu0 0.0
    %967 = vmatpush2.msra.mxu0 0.0
    %968 = vmatprep.subr.mxu0 0.0
    %969 = vmatpush2.msra.mxu0 0.0
    %970 = vmatprep.subr.mxu0 0.0
    %971 = vmatpush2.msra.mxu0 0.0
    %972 = vmatprep.subr.mxu0 0.0
    %973 = vmatpush2.msra.mxu0 0.0
    %974 = vmatprep.subr.mxu0 0.0
    %975 = vmatpush2.msra.mxu0 0.0
    %976 = vmatprep.subr.mxu0 0.0
    %977 = vmatpush2.msra.mxu0 0.0
    %978 = vmatprep.mubr.f32.mxu0 0.0
    %979 = vmatmul.mubr.f32.gmra.mxu0 %v912
    %v980 = vpop.f32.mrf.mxu0
    %v981 = vadd.f32 %v908, %v980
    %v982 = vpop.f32.mrf.mxu0
    %983 = vdwg.mxu0
    %v984 = vmax.f32 %v981, 0.0
    %v985 = vlaneseq
    %v986 = vshrl.u32 %v985, 7
    %v987 = vsub.s32 0, %v986
    %v988 = vrot.slane %v887, %v987
    %989 = vmatprep.subr.mxu0 0.0
    %990 = vmatpush1.msra.mxu0 %v886
    %991 = vmatprep.subr.mxu0 0.0
    %992 = vmatpush1.msra.mxu0 %v885
    %993 = vmatprep.subr.mxu0 0.0
    %994 = vmatpush1.msra.mxu0 %v884
    %995 = vmatprep.subr.mxu0 0.0
    %996 = vmatpush1.msra.mxu0 %v883
    %997 = vmatprep.subr.mxu0 0.0
    %998 = vmatpush1.msra.mxu0 %v882
    %999 = vmatprep.subr.mxu0 0.0
    %1000 = vmatpush1.msra.mxu0 %v881
    %1001 = vmatprep.subr.mxu0 0.0
    %1002 = vmatpush1.msra.mxu0 %v880
    %1003 = vmatprep.subr.mxu0 0.0
    %1004 = vmatpush1.msra.mxu0 %v879
    %1005 = vmatprep.subr.mxu0 0.0
    %1006 = vmatpush1.msra.mxu0 %v878
    %1007 = vmatprep.subr.mxu0 0.0
    %1008 = vmatpush1.msra.mxu0 %v877
    %1009 = vmatprep.subr.mxu0 0.0
    %1010 = vmatpush1.msra.mxu0 %v876
    %1011 = vmatprep.subr.mxu0 0.0
    %1012 = vmatpush1.msra.mxu0 %v875
    %1013 = vmatprep.subr.mxu0 0.0
    %1014 = vmatpush1.msra.mxu0 %v874
    %1015 = vmatprep.subr.mxu0 0.0
    %1016 = vmatpush1.msra.mxu0 %v873
    %1017 = vmatprep.subr.mxu0 0.0
    %1018 = vmatpush1.msra.mxu0 %v872
    %1019 = vmatprep.subr.mxu0 0.0
    %1020 = vmatpush1.msra.mxu0 %v871
    %1021 = vmatprep.subr.mxu0 0.0
    %1022 = vmatpush2.msra.mxu0 0.0
    %1023 = vmatprep.subr.mxu0 0.0
    %1024 = vmatpush2.msra.mxu0 0.0
    %1025 = vmatprep.subr.mxu0 0.0
    %1026 = vmatpush2.msra.mxu0 0.0
    %1027 = vmatprep.subr.mxu0 0.0
    %1028 = vmatpush2.msra.mxu0 0.0
    %1029 = vmatprep.subr.mxu0 0.0
    %1030 = vmatpush2.msra.mxu0 0.0
    %1031 = vmatprep.subr.mxu0 0.0
    %1032 = vmatpush2.msra.mxu0 0.0
    %1033 = vmatprep.subr.mxu0 0.0
    %1034 = vmatpush2.msra.mxu0 0.0
    %1035 = vmatprep.subr.mxu0 0.0
    %1036 = vmatpush2.msra.mxu0 0.0
    %1037 = vmatprep.subr.mxu0 0.0
    %1038 = vmatpush2.msra.mxu0 0.0
    %1039 = vmatprep.subr.mxu0 0.0
    %1040 = vmatpush2.msra.mxu0 0.0
    %1041 = vmatprep.subr.mxu0 0.0
    %1042 = vmatpush2.msra.mxu0 0.0
    %1043 = vmatprep.subr.mxu0 0.0
    %1044 = vmatpush2.msra.mxu0 0.0
    %1045 = vmatprep.subr.mxu0 0.0
    %1046 = vmatpush2.msra.mxu0 0.0
    %1047 = vmatprep.subr.mxu0 0.0
    %1048 = vmatpush2.msra.mxu0 0.0
    %1049 = vmatprep.subr.mxu0 0.0
    %1050 = vmatpush2.msra.mxu0 0.0
    %1051 = vmatprep.subr.mxu0 0.0
    %1052 = vmatpush2.msra.mxu0 0.0
    %1053 = vmatprep.mubr.f32.mxu0 0.0
    %1054 = vmatmul.mubr.f32.gmra.mxu0 %v984
    %v1055 = vpop.f32.mrf.mxu0
    %v1056 = vadd.f32 %v988, %v1055
    %v1057 = vpop.f32.mrf.mxu0
    %1058 = vdwg.mxu0
    %v1059 = vmax.f32 %v1056, 0.0
    %v1060 = vlaneseq
    %v1061 = vshrl.u32 %v1060, 7
    %v1062 = vsub.s32 0, %v1061
    %v1063 = vrot.slane %v904, %v1062
    %1064 = vmatprep.subr.mxu0 0.0
    %1065 = vmatpush1.msra.mxu0 %v903
    %1066 = vmatprep.subr.mxu0 0.0
    %1067 = vmatpush1.msra.mxu0 %v902
    %1068 = vmatprep.subr.mxu0 0.0
    %1069 = vmatpush1.msra.mxu0 %v901
    %1070 = vmatprep.subr.mxu0 0.0
    %1071 = vmatpush1.msra.mxu0 %v900
    %1072 = vmatprep.subr.mxu0 0.0
    %1073 = vmatpush1.msra.mxu0 %v899
    %1074 = vmatprep.subr.mxu0 0.0
    %1075 = vmatpush1.msra.mxu0 %v898
    %1076 = vmatprep.subr.mxu0 0.0
    %1077 = vmatpush1.msra.mxu0 %v897
    %1078 = vmatprep.subr.mxu0 0.0
    %1079 = vmatpush1.msra.mxu0 %v896
    %1080 = vmatprep.subr.mxu0 0.0
    %1081 = vmatpush1.msra.mxu0 %v895
    %1082 = vmatprep.subr.mxu0 0.0
    %1083 = vmatpush1.msra.mxu0 %v894
    %1084 = vmatprep.subr.mxu0 0.0
    %1085 = vmatpush1.msra.mxu0 %v893
    %1086 = vmatprep.subr.mxu0 0.0
    %1087 = vmatpush1.msra.mxu0 %v892
    %1088 = vmatprep.subr.mxu0 0.0
    %1089 = vmatpush1.msra.mxu0 %v891
    %1090 = vmatprep.subr.mxu0 0.0
    %1091 = vmatpush1.msra.mxu0 %v890
    %1092 = vmatprep.subr.mxu0 0.0
    %1093 = vmatpush1.msra.mxu0 %v889
    %1094 = vmatprep.subr.mxu0 0.0
    %1095 = vmatpush1.msra.mxu0 %v888
    %1096 = vmatprep.subr.mxu0 0.0
    %1097 = vmatpush2.msra.mxu0 0.0
    %1098 = vmatprep.subr.mxu0 0.0
    %1099 = vmatpush2.msra.mxu0 0.0
    %1100 = vmatprep.subr.mxu0 0.0
    %1101 = vmatpush2.msra.mxu0 0.0
    %1102 = vmatprep.subr.mxu0 0.0
    %1103 = vmatpush2.msra.mxu0 0.0
    %1104 = vmatprep.subr.mxu0 0.0
    %1105 = vmatpush2.msra.mxu0 0.0
    %1106 = vmatprep.subr.mxu0 0.0
    %1107 = vmatpush2.msra.mxu0 0.0
    %1108 = vmatprep.subr.mxu0 0.0
    %1109 = vmatpush2.msra.mxu0 0.0
    %1110 = vmatprep.subr.mxu0 0.0
    %1111 = vmatpush2.msra.mxu0 0.0
    %1112 = vmatprep.subr.mxu0 0.0
    %1113 = vmatpush2.msra.mxu0 0.0
    %1114 = vmatprep.subr.mxu0 0.0
    %1115 = vmatpush2.msra.mxu0 0.0
    %1116 = vmatprep.subr.mxu0 0.0
    %1117 = vmatpush2.msra.mxu0 0.0
    %1118 = vmatprep.subr.mxu0 0.0
    %1119 = vmatpush2.msra.mxu0 0.0
    %1120 = vmatprep.subr.mxu0 0.0
    %1121 = vmatpush2.msra.mxu0 0.0
    %1122 = vmatprep.subr.mxu0 0.0
    %1123 = vmatpush2.msra.mxu0 0.0
    %1124 = vmatprep.subr.mxu0 0.0
    %1125 = vmatpush2.msra.mxu0 0.0
    %1126 = vmatprep.subr.mxu0 0.0
    %1127 = vmatpush2.msra.mxu0 0.0
    %1128 = vmatprep.mubr.f32.mxu0 0.0
    %1129 = vmatmul.mubr.f32.gmra.mxu0 %v1059
    %v1130 = vpop.f32.mrf.mxu0
    %v1131 = vadd.f32 %v1063, %v1130
    %v1132 = vpop.f32.mrf.mxu0
    %1133 = vdwg.mxu0
    %1134 = vst [vmem:[#allocation7] sm:$0xff] %v1131
    // Predicated region
    $region18: #{tpu_custom_call.1} parent=1 // pred_check
      _
    $region19: #{tpu_custom_call.1} parent=1 // pred_check_branch
      %1136 = sbr.rel (0) target = $region21
    $region20: #{tpu_custom_call.1} parent=1 // pred_region
      %s1138 = ssub.s32 128, 128
      %1139 = vsyncadd [#allocation4], %s1138
      %s1141 = sshll.u32 [#allocation7], 4
      %s1142 = int_to_ptr.vmem [resolvable:$true] %s1141
      %1144 = dma.vmem_to_hbm [thread:$0]  %s1142, 128, %s2, [#allocation4]
    $region21: #{tpu_custom_call.1} parent=1 // pred_fallthru
      _
    // Predicated region
    $region22: #{tpu_custom_call.1} parent=1 // pred_check
      _
    $region23: #{tpu_custom_call.1} parent=1 // pred_check_branch
      %1146 = sbr.rel (0) target = $region25
    $region24: #{tpu_custom_call.1} parent=1 // pred_region
      %1147 = dma.done [#allocation4], 128
    $region25: #{tpu_custom_call.1} parent=1 // pred_fallthru
      _
    %1148 = vsyncpa [#allocation3], 1
    %1149 = vsyncpa [#allocation6], 1
    %1150 = vsyncpa [#allocation4], 1

</llo_original>
